<compile_context>
chip_gen: v7x
topology: tpu7x:2x2x1
jax: 0.10.0
libtpu: 0.0.40
codegen_flags: <defaults>
</compile_context>

<pallas_src>
from functools import partial

import jax
import jax.numpy as jnp
from jax.experimental import pallas as pl
from jax.experimental.pallas import tpu as pltpu


# CLIP image-normalisation constants (hard-coded in the PyTorch forward()).
_IMAGE_MEAN = (0.48145466, 0.4578275, 0.40821073)
_IMAGE_STD = (0.26862954, 0.26130258, 0.27577711)


# ---------------------------------------------------------------------------
# Kernel 1: image preprocessing  (clamp -> [0,1] -> per-channel mean/std)
# ---------------------------------------------------------------------------
def _preprocess_kernel(img_ref, out_ref, *, mean, std):
    """One image per grid step: [1, C, H, W] -> [1, C, H, W]."""
    for c in range(len(mean)):                    # static loop, C == 3
        x = img_ref[0, c]                         # [H, W]
        x = (jnp.clip(x, -1.0, 1.0) + 1.0) * 0.5
        out_ref[0, c] = (x - mean[c]) * (1.0 / std[c])


def clip_image_preprocess(image, *, size=224):
    """F.interpolate(size=224, mode='nearest') + CLIP mean/std normalisation.

    image: [Y, C, H, W] float32 (values roughly in [-1, 1]).
    Returns [Y, C, size, size] float32.
    """
    y, c, h, w = image.shape
    # Nearest-neighbour resize (same rule as torch F.interpolate mode='nearest':
    # src = floor(dst * in / out)).  Pure gather -> stays in the wrapper.
    idx_h = (jnp.arange(size) * h) // size
    idx_w = (jnp.arange(size) * w) // size
    img_rs = jnp.take(jnp.take(image, idx_h, axis=2), idx_w, axis=3)

    kernel = partial(_preprocess_kernel, mean=_IMAGE_MEAN, std=_IMAGE_STD)
    return pl.pallas_call(
        kernel,
        out_shape=jax.ShapeDtypeStruct((y, c, size, size), jnp.float32),
        grid=(y,),
        in_specs=[pl.BlockSpec((1, c, size, size), lambda i: (i, 0, 0, 0))],
        out_specs=pl.BlockSpec((1, c, size, size), lambda i: (i, 0, 0, 0)),
        compiler_params=pltpu.CompilerParams(
            dimension_semantics=("parallel",)),
    )(img_rs)


# ---------------------------------------------------------------------------
# Kernel 2: fused L2-normalise + similarity matmul (logits_per_text)
# ---------------------------------------------------------------------------
def _similarity_kernel(t_ref, i_ref, out_ref, *, logit_scale, use_bf16):
    """One (batch, text-tile, image-tile) step.

    t_ref: [1, tx, D] text features, i_ref: [1, ty, D] image features,
    out_ref: [1, tx, ty] logits_per_text.
    """
    t = t_ref[0]                                  # [tx, D]
    im = i_ref[0]                                 # [ty, D]

    # Row-wise unit L2 norm; statistics in f32, rsqrt lands on the EUP slot.
    t_n = t * jax.lax.rsqrt(jnp.sum(t * t, axis=-1, keepdims=True))
    i_n = im * jax.lax.rsqrt(jnp.sum(im * im, axis=-1, keepdims=True))

    if use_bf16:
        # bf16 MXU operands (f32 accumulate): full bf16 MXU rate on v6e/v7x
        # and half the operand traffic.  Norm math above stays in f32.
        t_n = t_n.astype(jnp.bfloat16)
        i_n = i_n.astype(jnp.bfloat16)

    # Contract on the feature dim of BOTH operands directly — the MXU consumes
    # the transposed-RHS form, so no materialised transpose / XLU work.
    sim = jax.lax.dot_general(
        t_n, i_n,
        dimension_numbers=(((1,), (1,)), ((), ())),
        preferred_element_type=jnp.float32)

    if logit_scale != 1.0:
        sim = sim * logit_scale
    out_ref[0] = sim.astype(out_ref.dtype)


def clip_similarity(text_features, image_features, batch_size=None, *,
                    logit_scale=1.0, use_bf16_mxu=False,
                    text_tile=256, image_tile=512):
    """logits_per_text = logit_scale * normalize(text) @ normalize(image).T

    text_features:  [X, D]   image_features: [Y, D]
    batch_size=None -> [X, Y];  batch_size=b -> [b, X/b, Y/b] (as in PyTorch).
    """
    if batch_size is None:
        t = text_features[None]                   # [1, X, D]
        im = image_features[None]                 # [1, Y, D]
    else:
        xt, d0 = text_features.shape
        yt, _ = image_features.shape
        t = text_features.reshape(batch_size, xt // batch_size, d0)
        im = image_features.reshape(batch_size, yt // batch_size, d0)

    b, x, d = t.shape
    _, y, _ = im.shape

    # Tile the text/image row axes (full-D contraction per tile, so no
    # reduction grid axis).  Fall back to full extent for small / ragged
    # shapes.  For large Y keep image_tile a multiple of 128 so output tiles
    # stay lane-dense (unmasked vst).
    tx = text_tile if (x > text_tile and x % text_tile == 0) else x
    ty = image_tile if (y > image_tile and y % image_tile == 0) else y

    kernel = partial(_similarity_kernel, logit_scale=logit_scale,
                     use_bf16=use_bf16_mxu)
    out = pl.pallas_call(
        kernel,
        out_shape=jax.ShapeDtypeStruct((b, x, y), jnp.float32),
        grid=(b, x // tx, y // ty),
        in_specs=[
            pl.BlockSpec((1, tx, d), lambda bi, xi, yi: (bi, xi, 0)),
            pl.BlockSpec((1, ty, d), lambda bi, xi, yi: (bi, yi, 0)),
        ],
        out_specs=pl.BlockSpec((1, tx, ty), lambda bi, xi, yi: (bi, xi, yi)),
        compiler_params=pltpu.CompilerParams(
            # All grid axes are independent -> all parallel (v7x megacore can
            # shard the tile axes even when b == 1).
            dimension_semantics=("parallel", "parallel", "parallel")),
    )(t, im)

    return out[0] if batch_size is None else out


# ---------------------------------------------------------------------------
# Pure-JAX references mirroring the PyTorch forward()
# ---------------------------------------------------------------------------
def _reference_preprocess(image, size=224):
    y, c, h, w = image.shape
    idx_h = (jnp.arange(size) * h) // size
    idx_w = (jnp.arange(size) * w) // size
    img = jnp.take(jnp.take(image, idx_h, axis=2), idx_w, axis=3)
    img = (jnp.clip(img, -1.0, 1.0) + 1.0) / 2.0
    mean = jnp.asarray(_IMAGE_MEAN, jnp.float32)[None, :, None, None]
    std = jnp.asarray(_IMAGE_STD, jnp.float32)[None, :, None, None]
    return (img - mean) / std


def _reference_similarity(text_features, image_features, batch_size=None,
                          logit_scale=1.0):
    tf = text_features / jnp.linalg.norm(text_features, axis=-1, keepdims=True)
    imf = image_features / jnp.linalg.norm(image_features, axis=-1,
                                           keepdims=True)
    if batch_size is None:
        return logit_scale * tf @ imf.T
    d = tf.shape[-1]
    tf = tf.reshape(batch_size, -1, d)
    imf = imf.reshape(batch_size, -1, d)
    return logit_scale * jnp.einsum('bxd,byd->bxy', tf, imf)


if __name__ == "__main__":
    key = jax.random.PRNGKey(0)
    k_img, k_txt, k_imf, k_txt2, k_imf2 = jax.random.split(key, 5)

    # ---- image preprocessing path --------------------------------------
    n_img, chan, hh, ww = 2, 3, 16, 16
    image = jax.random.uniform(k_img, (n_img, chan, hh, ww), jnp.float32,
                               -1.5, 1.5)
    pre = jax.block_until_ready(clip_image_preprocess(image))
    pre_ref = _reference_preprocess(image)
    assert pre.shape == (n_img, chan, 224, 224)
    assert jnp.allclose(pre, pre_ref, rtol=1e-5, atol=1e-5), (
        f"preprocess max err {jnp.max(jnp.abs(pre - pre_ref))}")

    # ---- similarity path ------------------------------------------------
    # TODO(synk): these feature matrices would come from the (untranslated)
    #             CLIP text/image encoders.
    n_text, n_image, feat = 8, 16, 32
    text_features = jax.random.normal(k_txt, (n_text, feat), jnp.float32)
    image_features = jax.random.normal(k_imf, (n_image, feat), jnp.float32)

    sim = jax.block_until_ready(clip_similarity(text_features, image_features))
    sim_ref = _reference_similarity(text_features, image_features)
    assert sim.shape == (n_text, n_image)
    assert jnp.allclose(sim, sim_ref, rtol=1e-5, atol=1e-5), (
        f"similarity max err {jnp.max(jnp.abs(sim - sim_ref))}")

    # batched variant (the batch_size kwarg of forward()).
    bsz = 2
    tf_b = jax.random.normal(k_txt2, (bsz * 4, feat), jnp.float32)
    if_b = jax.random.normal(k_imf2, (bsz * 8, feat), jnp.float32)
    sim_b = jax.block_until_ready(clip_similarity(tf_b, if_b, batch_size=bsz))
    sim_b_ref = _reference_similarity(tf_b, if_b, batch_size=bsz)
    assert sim_b.shape == (bsz, 4, 8)
    assert jnp.allclose(sim_b, sim_b_ref, rtol=1e-5, atol=1e-5), (
        f"batched similarity max err {jnp.max(jnp.abs(sim_b - sim_b_ref))}")

    # bf16-MXU fast path (bf16 operands / f32 accumulate -> looser tolerance).
    sim_bf16 = jax.block_until_ready(
        clip_similarity(text_features, image_features, use_bf16_mxu=True))
    assert jnp.allclose(sim_bf16, sim_ref, rtol=2e-2, atol=2e-2), (
        f"bf16 similarity max err {jnp.max(jnp.abs(sim_bf16 - sim_ref))}")

    print("KERNEL_OK")
</pallas_src>

<mosaic_0001>
module attributes {stable_mosaic.version = 11 : i64} {
  func.func @_preprocess_kernel(%arg0: i32, %arg1: memref<1x3x224x224xf32, #tpu.memory_space<vmem>>, %arg2: memref<1x3x224x224xf32, #tpu.memory_space<vmem>>) attributes {dimension_semantics = [#tpu.dimension_semantics<parallel>], iteration_bounds = array<i64: 2>, scalar_prefetch = 0 : i64, scratch_operands = 0 : i64, tpu.core_type = #tpu.core_type<tc>, window_params = [{transform_indices = @transform_0, window_bounds = array<i64: 1, 3, 224, 224>}, {transform_indices = @transform_1, window_bounds = array<i64: 1, 3, 224, 224>}]} {
    %c0 = arith.constant 0 : index
    %c0_0 = arith.constant 0 : index
    %c0_1 = arith.constant 0 : index
    %c0_2 = arith.constant 0 : index
    %0 = vector.load %arg1[%c0, %c0_0, %c0_1, %c0_2] : memref<1x3x224x224xf32, #tpu.memory_space<vmem>>, vector<1x1x224x224xf32>
    %1 = vector.shape_cast %0 : vector<1x1x224x224xf32> to vector<224x224xf32>
    %cst = arith.constant -1.000000e+00 : f32
    %cst_3 = arith.constant 1.000000e+00 : f32
    %2 = vector.broadcast %cst : f32 to vector<224x224xf32>
    %3 = arith.maximumf %2, %1 : vector<224x224xf32>
    %4 = vector.broadcast %cst_3 : f32 to vector<224x224xf32>
    %5 = arith.minimumf %4, %3 : vector<224x224xf32>
    %cst_4 = arith.constant 1.000000e+00 : f32
    %6 = vector.broadcast %cst_4 : f32 to vector<224x224xf32>
    %7 = arith.addf %5, %6 : vector<224x224xf32>
    %cst_5 = arith.constant 5.000000e-01 : f32
    %8 = vector.broadcast %cst_5 : f32 to vector<224x224xf32>
    %9 = arith.mulf %7, %8 : vector<224x224xf32>
    %cst_6 = arith.constant 0.48145467 : f32
    %10 = vector.broadcast %cst_6 : f32 to vector<224x224xf32>
    %11 = arith.subf %9, %10 : vector<224x224xf32>
    %cst_7 = arith.constant 3.72259879 : f32
    %12 = vector.broadcast %cst_7 : f32 to vector<224x224xf32>
    %13 = arith.mulf %11, %12 : vector<224x224xf32>
    %c0_8 = arith.constant 0 : index
    %c0_9 = arith.constant 0 : index
    %c0_10 = arith.constant 0 : index
    %c0_11 = arith.constant 0 : index
    %14 = vector.load %arg2[%c0_8, %c0_9, %c0_10, %c0_11] : memref<1x3x224x224xf32, #tpu.memory_space<vmem>>, vector<1x1x224x224xf32>
    %15 = vector.shape_cast %14 : vector<1x1x224x224xf32> to vector<224x224xf32>
    %16 = vector.shape_cast %13 : vector<224x224xf32> to vector<1x1x224x224xf32>
    tpu.vector_store %arg2[%c0_8, %c0_9, %c0_10, %c0_11], %16 {strides = array<i32>} : memref<1x3x224x224xf32, #tpu.memory_space<vmem>>, vector<1x1x224x224xf32>,
    %c0_12 = arith.constant 0 : index
    %c1 = arith.constant 1 : index
    %c0_13 = arith.constant 0 : index
    %c0_14 = arith.constant 0 : index
    %17 = vector.load %arg1[%c0_12, %c1, %c0_13, %c0_14] : memref<1x3x224x224xf32, #tpu.memory_space<vmem>>, vector<1x1x224x224xf32>
    %18 = vector.shape_cast %17 : vector<1x1x224x224xf32> to vector<224x224xf32>
    %cst_15 = arith.constant -1.000000e+00 : f32
    %cst_16 = arith.constant 1.000000e+00 : f32
    %19 = vector.broadcast %cst_15 : f32 to vector<224x224xf32>
    %20 = arith.maximumf %19, %18 : vector<224x224xf32>
    %21 = vector.broadcast %cst_16 : f32 to vector<224x224xf32>
    %22 = arith.minimumf %21, %20 : vector<224x224xf32>
    %cst_17 = arith.constant 1.000000e+00 : f32
    %23 = vector.broadcast %cst_17 : f32 to vector<224x224xf32>
    %24 = arith.addf %22, %23 : vector<224x224xf32>
    %cst_18 = arith.constant 5.000000e-01 : f32
    %25 = vector.broadcast %cst_18 : f32 to vector<224x224xf32>
    %26 = arith.mulf %24, %25 : vector<224x224xf32>
    %cst_19 = arith.constant 0.457827508 : f32
    %27 = vector.broadcast %cst_19 : f32 to vector<224x224xf32>
    %28 = arith.subf %26, %27 : vector<224x224xf32>
    %cst_20 = arith.constant 3.82698107 : f32
    %29 = vector.broadcast %cst_20 : f32 to vector<224x224xf32>
    %30 = arith.mulf %28, %29 : vector<224x224xf32>
    %c0_21 = arith.constant 0 : index
    %c1_22 = arith.constant 1 : index
    %c0_23 = arith.constant 0 : index
    %c0_24 = arith.constant 0 : index
    %31 = vector.load %arg2[%c0_21, %c1_22, %c0_23, %c0_24] : memref<1x3x224x224xf32, #tpu.memory_space<vmem>>, vector<1x1x224x224xf32>
    %32 = vector.shape_cast %31 : vector<1x1x224x224xf32> to vector<224x224xf32>
    %33 = vector.shape_cast %30 : vector<224x224xf32> to vector<1x1x224x224xf32>
    tpu.vector_store %arg2[%c0_21, %c1_22, %c0_23, %c0_24], %33 {strides = array<i32>} : memref<1x3x224x224xf32, #tpu.memory_space<vmem>>, vector<1x1x224x224xf32>,
    %c0_25 = arith.constant 0 : index
    %c2 = arith.constant 2 : index
    %c0_26 = arith.constant 0 : index
    %c0_27 = arith.constant 0 : index
    %34 = vector.load %arg1[%c0_25, %c2, %c0_26, %c0_27] : memref<1x3x224x224xf32, #tpu.memory_space<vmem>>, vector<1x1x224x224xf32>
    %35 = vector.shape_cast %34 : vector<1x1x224x224xf32> to vector<224x224xf32>
    %cst_28 = arith.constant -1.000000e+00 : f32
    %cst_29 = arith.constant 1.000000e+00 : f32
    %36 = vector.broadcast %cst_28 : f32 to vector<224x224xf32>
    %37 = arith.maximumf %36, %35 : vector<224x224xf32>
    %38 = vector.broadcast %cst_29 : f32 to vector<224x224xf32>
    %39 = arith.minimumf %38, %37 : vector<224x224xf32>
    %cst_30 = arith.constant 1.000000e+00 : f32
    %40 = vector.broadcast %cst_30 : f32 to vector<224x224xf32>
    %41 = arith.addf %39, %40 : vector<224x224xf32>
    %cst_31 = arith.constant 5.000000e-01 : f32
    %42 = vector.broadcast %cst_31 : f32 to vector<224x224xf32>
    %43 = arith.mulf %41, %42 : vector<224x224xf32>
    %cst_32 = arith.constant 0.408210725 : f32
    %44 = vector.broadcast %cst_32 : f32 to vector<224x224xf32>
    %45 = arith.subf %43, %44 : vector<224x224xf32>
    %cst_33 = arith.constant 3.62611675 : f32
    %46 = vector.broadcast %cst_33 : f32 to vector<224x224xf32>
    %47 = arith.mulf %45, %46 : vector<224x224xf32>
    %c0_34 = arith.constant 0 : index
    %c2_35 = arith.constant 2 : index
    %c0_36 = arith.constant 0 : index
    %c0_37 = arith.constant 0 : index
    %48 = vector.load %arg2[%c0_34, %c2_35, %c0_36, %c0_37] : memref<1x3x224x224xf32, #tpu.memory_space<vmem>>, vector<1x1x224x224xf32>
    %49 = vector.shape_cast %48 : vector<1x1x224x224xf32> to vector<224x224xf32>
    %50 = vector.shape_cast %47 : vector<224x224xf32> to vector<1x1x224x224xf32>
    tpu.vector_store %arg2[%c0_34, %c2_35, %c0_36, %c0_37], %50 {strides = array<i32>} : memref<1x3x224x224xf32, #tpu.memory_space<vmem>>, vector<1x1x224x224xf32>,
    return
  }
  func.func @transform_0(%arg0: i32) -> (i32, i32, i32, i32) {
    %c0_i32 = arith.constant 0 : i32
    %c0_i32_0 = arith.constant 0 : i32
    %c0_i32_1 = arith.constant 0 : i32
    %c0_i32_2 = arith.constant 0 : i32
    return %arg0, %c0_i32, %c0_i32_0, %c0_i32_1 : i32, i32, i32, i32
  }
  func.func @transform_1(%arg0: i32) -> (i32, i32, i32, i32) {
    %c0_i32 = arith.constant 0 : i32
    %c0_i32_0 = arith.constant 0 : i32
    %c0_i32_1 = arith.constant 0 : i32
    %c0_i32_2 = arith.constant 0 : i32
    return %arg0, %c0_i32, %c0_i32_0, %c0_i32_1 : i32, i32, i32, i32
  }
}

</mosaic_0001>

<llo_original>
// kernel: tpu_custom_call.1
$region0: #{tpu_custom_call.1}
  #allocation0 [shape = 'u32[]', space=smem, size = 0x4, offset = 0x4, fixed_abs, tag = 'smem constant byte address 0x4 - core index']
  #allocation1 [shape = 'u32[144,128]{1,0:T(1,128)}', space=vmem, size = 0x12000, scoped, tag = 'internal scratch']
  %s0 = inlined_call_operand.hbm [shape: f32[2,3,224,224], index: 0, kind: input, shape index: {}]
  %s1 = inlined_call_operand.hbm [shape: f32[2,3,224,224], index: 1, kind: output, shape index: {}]
  %s2 = sld [smem:[#allocation0]]
  $region41: #{tpu_custom_call.1} parent=0
    _
  %s4 = ssub.s32 1, %s2
  %s5 = scalar_select 0, %s4, %s2
  $region1: #{tpu_custom_call.1} parent=0
    #allocation2 [shape = 'u8[1376256]{0}', space=vmem, size = 0x150000, scoped, tag = 'input window, operand 0']
    #allocation3 [shape = 's32[2]{0}', space=sflag, size = 0x8, scoped, tag = 'scoped memory for tpu_custom_call.1']
    #allocation4 [shape = 's32[2]{0}', space=sflag, size = 0x8, scoped, tag = 'scoped memory for tpu_custom_call.1']
    #allocation5 [shape = 'u8[1376256]{0}', space=vmem, size = 0x150000, scoped, tag = 'output window, operand 0']
    %6 = vsyncpa [#allocation3], 0
    %s7 = scalar_lea.sflag [#allocation3], 1
    %8 = vsyncpa %s7, 0
    %9 = vsyncpa [#allocation4], 0
    %s10 = scalar_lea.sflag [#allocation4], 1
    %11 = vsyncpa %s10, 0
    loop: start=0, step=1, limit=4
    $region2: #{tpu_custom_call.1} parent=1 // loop_pre_header
      _
    $region3: #{tpu_custom_call.1} parent=1 // loop_header
      %s13 = sphi 0, %s17
      %p14 = scmp.ge.s32.totalorder %s13, 4
      %s23 = sphi 0, %s25
      %s26 = sphi 0, %s23
      %s27 = sphi 0, %s26
      %s43 = sphi 0, %s27
      %s49 = sphi 0, %s51
      %s52 = sphi 0, %s49
      %s53 = sphi 0, %s52
      %s69 = sphi 0, %s53
    $region4: #{tpu_custom_call.1} parent=1 // loop_header_branch
      %16 = sbr.rel (%p14) target = $region8
    $region5: #{tpu_custom_call.1} parent=1 // loop_body
      %s18 = ssub.s32 %s13, 1
      %s19 = ssub.s32 %s13, 2
      %s20 = sadd.s32 %s13, 1
      %s21 = ssub.s32 %s13, %s20
      %p22 = scmp.eq.s32.totalorder %s21, 0
      %s24 = sadd.s32 %s23, 1
      %s25 = scalar_select %p22, %s23, %s24
      %p28 = pneg %p22
      %p29 = scmp.eq.s32.totalorder %s13, 1
      %p30 = por %p28, %p29
      %p31 = scmp.ne.s32.totalorder %s23, %s26
      %p32 = scmp.eq.s32.totalorder %s13, 0
      %p33 = por %p31, %p32
      %p34 = scmp.ne.s32.totalorder %s23, %s26
      %p35 = scmp.eq.s32.totalorder %s18, 1
      %p36 = por %p34, %p35
      %p37 = scmp.ne.s32.totalorder %s26, %s27
      %p38 = scmp.eq.s32.totalorder %s18, 0
      %p39 = por %p37, %p38
      %p40 = scmp.ne.s32.totalorder %s26, %s27
      %p41 = scmp.eq.s32.totalorder %s19, 1
      %p42 = por %p40, %p41
      %p44 = scmp.ne.s32.totalorder %s27, %s43
      %p45 = scmp.eq.s32.totalorder %s19, 0
      %p46 = por %p44, %p45
      %s47 = ssub.s32 %s13, %s20
      %p48 = scmp.eq.s32.totalorder %s47, 0
      %s50 = sadd.s32 %s49, 1
      %s51 = scalar_select %p48, %s49, %s50
      %p54 = pneg %p48
      %p55 = scmp.eq.s32.totalorder %s13, 1
      %p56 = por %p54, %p55
      %p57 = scmp.ne.s32.totalorder %s49, %s52
      %p58 = scmp.eq.s32.totalorder %s13, 0
      %p59 = por %p57, %p58
      %p60 = scmp.ne.s32.totalorder %s49, %s52
      %p61 = scmp.eq.s32.totalorder %s18, 1
      %p62 = por %p60, %p61
      %p63 = scmp.ne.s32.totalorder %s52, %s53
      %p64 = scmp.eq.s32.totalorder %s18, 0
      %p65 = por %p63, %p64
      %p66 = scmp.ne.s32.totalorder %s52, %s53
      %p67 = scmp.eq.s32.totalorder %s19, 1
      %p68 = por %p66, %p67
      %p70 = scmp.ne.s32.totalorder %s53, %s69
      %p71 = scmp.eq.s32.totalorder %s19, 0
      %p72 = por %p70, %p71
      %p73 = scmp.le.s32.totalorder 1, %s13
      %p74 = scmp.lt.s32.totalorder %s13, 3
      %p75 = pnand %p73, %p74
      %p76 = pneg %p75
      // Predicated region
      $region9: #{tpu_custom_call.1} parent=5 // pred_check
        _
      $region10: #{tpu_custom_call.1} parent=5 // pred_check_branch
        %78 = sbr.rel (%p75) target = $region12
      $region11: #{tpu_custom_call.1} parent=5 // pred_region
        %s79 = ssub.s32 %s13, 1
      $region12: #{tpu_custom_call.1} parent=5 // pred_fallthru
        _
      %p80 = scmp.lt.s32.totalorder %s13, 2
      // Predicated region
      $region13: #{tpu_custom_call.1} parent=5 // pred_check
        %p81 = pneg %p80
      $region14: #{tpu_custom_call.1} parent=5 // pred_check_branch
        %83 = sbr.rel (%p81) target = $region16
      $region15: #{tpu_custom_call.1} parent=5 // pred_region
        // Predicated region
        $region17: #{tpu_custom_call.1} parent=15 // pred_check
          %p84 = pneg %p33
        $region18: #{tpu_custom_call.1} parent=15 // pred_check_branch
          %86 = sbr.rel (%p84) target = $region20
        $region19: #{tpu_custom_call.1} parent=15 // pred_region
          %s87 = sand.u32 %s23, 1
          %s88 = scalar_lea.sflag [#allocation3], %s87
          %s89 = sand.u32 %s23, 1
          %s90 = smul.addr %s89, 1344
          %s91 = scalar_lea.vmem [#allocation2], %s90
          %s93 = ssub.s32 21504, 21504
          %94 = vsyncadd %s88, %s93
          %s95 = smul.addr %s13, 168
          %s96 = smul.addr %s95, 128
          %s97 = scalar_lea.hbm %s0, %s96
          %s98 = sshll.u32 %s91, 4
          %s99 = int_to_ptr.vmem [resolvable:$true] %s98
          %104 = dma.hbm_to_vmem [thread:$0]  %s97, 21504, %s99, %s88, 256, 256, 16
        $region20: #{tpu_custom_call.1} parent=15 // pred_fallthru
          _
      $region16: #{tpu_custom_call.1} parent=5 // pred_fallthru
        _
      %p105 = scmp.le.s32.totalorder 1, %s13
      %p106 = scmp.lt.s32.totalorder %s13, 3
      %p107 = pnand %p105, %p106
      %p108 = pneg %p107
      // Predicated region
      $region21: #{tpu_custom_call.1} parent=5 // pred_check
        _
      $region22: #{tpu_custom_call.1} parent=5 // pred_check_branch
        %110 = sbr.rel (%p107) target = $region24
      $region23: #{tpu_custom_call.1} parent=5 // pred_region
        %s111 = ssub.s32 %s13, 1
        %s112 = sand.u32 %s26, 1
        %s113 = scalar_lea.sflag [#allocation3], %s112
        %s114 = sand.u32 %s26, 1
        %s115 = smul.addr %s114, 1344
        %s116 = scalar_lea.vmem [#allocation2], %s115
        // Predicated region
        $region25: #{tpu_custom_call.1} parent=23 // pred_check
          %p117 = pneg %p39
        $region26: #{tpu_custom_call.1} parent=23 // pred_check_branch
          %119 = sbr.rel (%p117) target = $region28
        $region27: #{tpu_custom_call.1} parent=23 // pred_region
          %120 = dma.done %s113, 21504
        $region28: #{tpu_custom_call.1} parent=23 // pred_fallthru
          _
        %s121 = sand.u32 %s26, 1
        %s122 = scalar_lea.sflag [#allocation3], %s121
        %s123 = sand.u32 %s26, 1
        %s124 = smul.addr %s123, 1344
        %s125 = scalar_lea.vmem [#allocation2], %s124
        %p126 = pneg %p39
        %p127 = pneg %p36
        %p128 = pneg %p65
        %p129 = pneg %p62
        %s130 = sand.u32 %s52, 1
        %s131 = scalar_lea.sflag [#allocation4], %s130
        %s132 = sand.u32 %s52, 1
        %s133 = smul.addr %s132, 1344
        %s134 = scalar_lea.vmem [#allocation5], %s133
        %v135 = vld [vmem:[%s116] sm:$0xff]
        %v136 = vld [vmem:[%s116 + $0x8] sm:$0xff]
        %v137 = vld [vmem:[%s116 + $0x10] sm:$0xff]
        %v138 = vld [vmem:[%s116 + $0x18] sm:$0xff]
        %v139 = vld [vmem:[%s116 + $0x20] sm:$0xff]
        %v140 = vld [vmem:[%s116 + $0x28] sm:$0xff]
        %v141 = vld [vmem:[%s116 + $0x30] sm:$0xff]
        %v142 = vld [vmem:[%s116 + $0x38] sm:$0xff]
        %v143 = vld [vmem:[%s116 + $0x40] sm:$0xff]
        %v144 = vld [vmem:[%s116 + $0x48] sm:$0xff]
        %v145 = vld [vmem:[%s116 + $0x50] sm:$0xff]
        %v146 = vld [vmem:[%s116 + $0x58] sm:$0xff]
        %v147 = vld [vmem:[%s116 + $0x60] sm:$0xff]
        %v148 = vld [vmem:[%s116 + $0x68] sm:$0xff]
        %v149 = vld [vmem:[%s116 + $0x70] sm:$0xff]
        %v150 = vld [vmem:[%s116 + $0x78] sm:$0xff]
        %v151 = vld [vmem:[%s116 + $0x80] sm:$0xff]
        %v152 = vld [vmem:[%s116 + $0x88] sm:$0xff]
        %v153 = vld [vmem:[%s116 + $0x90] sm:$0xff]
        %v154 = vld [vmem:[%s116 + $0x98] sm:$0xff]
        %v155 = vld [vmem:[%s116 + $0xa0] sm:$0xff]
        %v156 = vld [vmem:[%s116 + $0xa8] sm:$0xff]
        %v157 = vld [vmem:[%s116 + $0xb0] sm:$0xff]
        %v158 = vld [vmem:[%s116 + $0xb8] sm:$0xff]
        %v159 = vld [vmem:[%s116 + $0xc0] sm:$0xff]
        %v160 = vld [vmem:[%s116 + $0xc8] sm:$0xff]
        %v161 = vld [vmem:[%s116 + $0xd0] sm:$0xff]
        %v162 = vld [vmem:[%s116 + $0xd8] sm:$0xff]
        %v163 = vld [vmem:[%s116 + $0xe0] sm:$0xff]
        %v164 = vld [vmem:[%s116 + $0xe8] sm:$0xff]
        %v165 = vld [vmem:[%s116 + $0xf0] sm:$0xff]
        %v166 = vld [vmem:[%s116 + $0xf8] sm:$0xff]
        %v167 = vld [vmem:[%s116 + $0x100] sm:$0xff]
        %v168 = vld [vmem:[%s116 + $0x108] sm:$0xff]
        %v169 = vld [vmem:[%s116 + $0x110] sm:$0xff]
        %v170 = vld [vmem:[%s116 + $0x118] sm:$0xff]
        %v171 = vld [vmem:[%s116 + $0x120] sm:$0xff]
        %v172 = vld [vmem:[%s116 + $0x128] sm:$0xff]
        %v173 = vld [vmem:[%s116 + $0x130] sm:$0xff]
        %v174 = vld [vmem:[%s116 + $0x138] sm:$0xff]
        %v175 = vld [vmem:[%s116 + $0x140] sm:$0xff]
        %v176 = vld [vmem:[%s116 + $0x148] sm:$0xff]
        %v177 = vld [vmem:[%s116 + $0x150] sm:$0xff]
        %v178 = vld [vmem:[%s116 + $0x158] sm:$0xff]
        %v179 = vld [vmem:[%s116 + $0x160] sm:$0xff]
        %v180 = vld [vmem:[%s116 + $0x168] sm:$0xff]
        %v181 = vld [vmem:[%s116 + $0x170] sm:$0xff]
        %v182 = vld [vmem:[%s116 + $0x178] sm:$0xff]
        %v183 = vld [vmem:[%s116 + $0x180] sm:$0xff]
        %v184 = vld [vmem:[%s116 + $0x188] sm:$0xff]
        %v185 = vld [vmem:[%s116 + $0x190] sm:$0xff]
        %v186 = vld [vmem:[%s116 + $0x198] sm:$0xff]
        %v187 = vld [vmem:[%s116 + $0x1a0] sm:$0xff]
        %v188 = vld [vmem:[%s116 + $0x1a8] sm:$0xff]
        %v189 = vld [vmem:[%s116 + $0x1b0] sm:$0xff]
        %v190 = vld [vmem:[%s116 + $0x1b8] sm:$0xff]
        %v191 = vmax.f32 %v135, -1.0
        %v192 = vmax.f32 %v136, -1.0
        %v193 = vmax.f32 %v137, -1.0
        %v194 = vmax.f32 %v138, -1.0
        %v195 = vmax.f32 %v139, -1.0
        %v196 = vmax.f32 %v140, -1.0
        %v197 = vmax.f32 %v141, -1.0
        %v198 = vmax.f32 %v142, -1.0
        %v199 = vmax.f32 %v143, -1.0
        %v200 = vmax.f32 %v144, -1.0
        %v201 = vmax.f32 %v145, -1.0
        %v202 = vmax.f32 %v146, -1.0
        %v203 = vmax.f32 %v147, -1.0
        %v204 = vmax.f32 %v148, -1.0
        %v205 = vmax.f32 %v149, -1.0
        %v206 = vmax.f32 %v150, -1.0
        %v207 = vmax.f32 %v151, -1.0
        %v208 = vmax.f32 %v152, -1.0
        %v209 = vmax.f32 %v153, -1.0
        %v210 = vmax.f32 %v154, -1.0
        %v211 = vmax.f32 %v155, -1.0
        %v212 = vmax.f32 %v156, -1.0
        %v213 = vmax.f32 %v157, -1.0
        %v214 = vmax.f32 %v158, -1.0
        %v215 = vmax.f32 %v159, -1.0
        %v216 = vmax.f32 %v160, -1.0
        %v217 = vmax.f32 %v161, -1.0
        %v218 = vmax.f32 %v162, -1.0
        %v219 = vmax.f32 %v163, -1.0
        %v220 = vmax.f32 %v164, -1.0
        %v221 = vmax.f32 %v165, -1.0
        %v222 = vmax.f32 %v166, -1.0
        %v223 = vmax.f32 %v167, -1.0
        %v224 = vmax.f32 %v168, -1.0
        %v225 = vmax.f32 %v169, -1.0
        %v226 = vmax.f32 %v170, -1.0
        %v227 = vmax.f32 %v171, -1.0
        %v228 = vmax.f32 %v172, -1.0
        %v229 = vmax.f32 %v173, -1.0
        %v230 = vmax.f32 %v174, -1.0
        %v231 = vmax.f32 %v175, -1.0
        %v232 = vmax.f32 %v176, -1.0
        %v233 = vmax.f32 %v177, -1.0
        %v234 = vmax.f32 %v178, -1.0
        %v235 = vmax.f32 %v179, -1.0
        %v236 = vmax.f32 %v180, -1.0
        %v237 = vmax.f32 %v181, -1.0
        %v238 = vmax.f32 %v182, -1.0
        %v239 = vmax.f32 %v183, -1.0
        %v240 = vmax.f32 %v184, -1.0
        %v241 = vmax.f32 %v185, -1.0
        %v242 = vmax.f32 %v186, -1.0
        %v243 = vmax.f32 %v187, -1.0
        %v244 = vmax.f32 %v188, -1.0
        %v245 = vmax.f32 %v189, -1.0
        %v246 = vmax.f32 %v190, -1.0
        %v247 = vmin.f32 %v191, 1.0
        %v248 = vmin.f32 %v192, 1.0
        %v249 = vmin.f32 %v193, 1.0
        %v250 = vmin.f32 %v194, 1.0
        %v251 = vmin.f32 %v195, 1.0
        %v252 = vmin.f32 %v196, 1.0
        %v253 = vmin.f32 %v197, 1.0
        %v254 = vmin.f32 %v198, 1.0
        %v255 = vmin.f32 %v199, 1.0
        %v256 = vmin.f32 %v200, 1.0
        %v257 = vmin.f32 %v201, 1.0
        %v258 = vmin.f32 %v202, 1.0
        %v259 = vmin.f32 %v203, 1.0
        %v260 = vmin.f32 %v204, 1.0
        %v261 = vmin.f32 %v205, 1.0
        %v262 = vmin.f32 %v206, 1.0
        %v263 = vmin.f32 %v207, 1.0
        %v264 = vmin.f32 %v208, 1.0
        %v265 = vmin.f32 %v209, 1.0
        %v266 = vmin.f32 %v210, 1.0
        %v267 = vmin.f32 %v211, 1.0
        %v268 = vmin.f32 %v212, 1.0
        %v269 = vmin.f32 %v213, 1.0
        %v270 = vmin.f32 %v214, 1.0
        %v271 = vmin.f32 %v215, 1.0
        %v272 = vmin.f32 %v216, 1.0
        %v273 = vmin.f32 %v217, 1.0
        %v274 = vmin.f32 %v218, 1.0
        %v275 = vmin.f32 %v219, 1.0
        %v276 = vmin.f32 %v220, 1.0
        %v277 = vmin.f32 %v221, 1.0
        %v278 = vmin.f32 %v222, 1.0
        %v279 = vmin.f32 %v223, 1.0
        %v280 = vmin.f32 %v224, 1.0
        %v281 = vmin.f32 %v225, 1.0
        %v282 = vmin.f32 %v226, 1.0
        %v283 = vmin.f32 %v227, 1.0
        %v284 = vmin.f32 %v228, 1.0
        %v285 = vmin.f32 %v229, 1.0
        %v286 = vmin.f32 %v230, 1.0
        %v287 = vmin.f32 %v231, 1.0
        %v288 = vmin.f32 %v232, 1.0
        %v289 = vmin.f32 %v233, 1.0
        %v290 = vmin.f32 %v234, 1.0
        %v291 = vmin.f32 %v235, 1.0
        %v292 = vmin.f32 %v236, 1.0
        %v293 = vmin.f32 %v237, 1.0
        %v294 = vmin.f32 %v238, 1.0
        %v295 = vmin.f32 %v239, 1.0
        %v296 = vmin.f32 %v240, 1.0
        %v297 = vmin.f32 %v241, 1.0
        %v298 = vmin.f32 %v242, 1.0
        %v299 = vmin.f32 %v243, 1.0
        %v300 = vmin.f32 %v244, 1.0
        %v301 = vmin.f32 %v245, 1.0
        %v302 = vmin.f32 %v246, 1.0
        %v303 = vadd.f32 %v247, 1.0
        %v304 = vadd.f32 %v248, 1.0
        %v305 = vadd.f32 %v249, 1.0
        %v306 = vadd.f32 %v250, 1.0
        %v307 = vadd.f32 %v251, 1.0
        %v308 = vadd.f32 %v252, 1.0
        %v309 = vadd.f32 %v253, 1.0
        %v310 = vadd.f32 %v254, 1.0
        %v311 = vadd.f32 %v255, 1.0
        %v312 = vadd.f32 %v256, 1.0
        %v313 = vadd.f32 %v257, 1.0
        %v314 = vadd.f32 %v258, 1.0
        %v315 = vadd.f32 %v259, 1.0
        %v316 = vadd.f32 %v260, 1.0
        %v317 = vadd.f32 %v261, 1.0
        %v318 = vadd.f32 %v262, 1.0
        %v319 = vadd.f32 %v263, 1.0
        %v320 = vadd.f32 %v264, 1.0
        %v321 = vadd.f32 %v265, 1.0
        %v322 = vadd.f32 %v266, 1.0
        %v323 = vadd.f32 %v267, 1.0
        %v324 = vadd.f32 %v268, 1.0
        %v325 = vadd.f32 %v269, 1.0
        %v326 = vadd.f32 %v270, 1.0
        %v327 = vadd.f32 %v271, 1.0
        %v328 = vadd.f32 %v272, 1.0
        %v329 = vadd.f32 %v273, 1.0
        %v330 = vadd.f32 %v274, 1.0
        %v331 = vadd.f32 %v275, 1.0
        %v332 = vadd.f32 %v276, 1.0
        %v333 = vadd.f32 %v277, 1.0
        %v334 = vadd.f32 %v278, 1.0
        %v335 = vadd.f32 %v279, 1.0
        %v336 = vadd.f32 %v280, 1.0
        %v337 = vadd.f32 %v281, 1.0
        %v338 = vadd.f32 %v282, 1.0
        %v339 = vadd.f32 %v283, 1.0
        %v340 = vadd.f32 %v284, 1.0
        %v341 = vadd.f32 %v285, 1.0
        %v342 = vadd.f32 %v286, 1.0
        %v343 = vadd.f32 %v287, 1.0
        %v344 = vadd.f32 %v288, 1.0
        %v345 = vadd.f32 %v289, 1.0
        %v346 = vadd.f32 %v290, 1.0
        %v347 = vadd.f32 %v291, 1.0
        %v348 = vadd.f32 %v292, 1.0
        %v349 = vadd.f32 %v293, 1.0
        %v350 = vadd.f32 %v294, 1.0
        %v351 = vadd.f32 %v295, 1.0
        %v352 = vadd.f32 %v296, 1.0
        %v353 = vadd.f32 %v297, 1.0
        %v354 = vadd.f32 %v298, 1.0
        %v355 = vadd.f32 %v299, 1.0
        %v356 = vadd.f32 %v300, 1.0
        %v357 = vadd.f32 %v301, 1.0
        %v358 = vadd.f32 %v302, 1.0
        %v359 = vmul.f32 %v303, 0.5
        %v360 = vmul.f32 %v304, 0.5
        %v361 = vmul.f32 %v305, 0.5
        %v362 = vmul.f32 %v306, 0.5
        %v363 = vmul.f32 %v307, 0.5
        %v364 = vmul.f32 %v308, 0.5
        %v365 = vmul.f32 %v309, 0.5
        %v366 = vmul.f32 %v310, 0.5
        %v367 = vmul.f32 %v311, 0.5
        %v368 = vmul.f32 %v312, 0.5
        %v369 = vmul.f32 %v313, 0.5
        %v370 = vmul.f32 %v314, 0.5
        %v371 = vmul.f32 %v315, 0.5
        %v372 = vmul.f32 %v316, 0.5
        %v373 = vmul.f32 %v317, 0.5
        %v374 = vmul.f32 %v318, 0.5
        %v375 = vmul.f32 %v319, 0.5
        %v376 = vmul.f32 %v320, 0.5
        %v377 = vmul.f32 %v321, 0.5
        %v378 = vmul.f32 %v322, 0.5
        %v379 = vmul.f32 %v323, 0.5
        %v380 = vmul.f32 %v324, 0.5
        %v381 = vmul.f32 %v325, 0.5
        %v382 = vmul.f32 %v326, 0.5
        %v383 = vmul.f32 %v327, 0.5
        %v384 = vmul.f32 %v328, 0.5
        %v385 = vmul.f32 %v329, 0.5
        %v386 = vmul.f32 %v330, 0.5
        %v387 = vmul.f32 %v331, 0.5
        %v388 = vmul.f32 %v332, 0.5
        %v389 = vmul.f32 %v333, 0.5
        %v390 = vmul.f32 %v334, 0.5
        %v391 = vmul.f32 %v335, 0.5
        %v392 = vmul.f32 %v336, 0.5
        %v393 = vmul.f32 %v337, 0.5
        %v394 = vmul.f32 %v338, 0.5
        %v395 = vmul.f32 %v339, 0.5
        %v396 = vmul.f32 %v340, 0.5
        %v397 = vmul.f32 %v341, 0.5
        %v398 = vmul.f32 %v342, 0.5
        %v399 = vmul.f32 %v343, 0.5
        %v400 = vmul.f32 %v344, 0.5
        %v401 = vmul.f32 %v345, 0.5
        %v402 = vmul.f32 %v346, 0.5
        %v403 = vmul.f32 %v347, 0.5
        %v404 = vmul.f32 %v348, 0.5
        %v405 = vmul.f32 %v349, 0.5
        %v406 = vmul.f32 %v350, 0.5
        %v407 = vmul.f32 %v351, 0.5
        %v408 = vmul.f32 %v352, 0.5
        %v409 = vmul.f32 %v353, 0.5
        %v410 = vmul.f32 %v354, 0.5
        %v411 = vmul.f32 %v355, 0.5
        %v412 = vmul.f32 %v356, 0.5
        %v413 = vmul.f32 %v357, 0.5
        %v414 = vmul.f32 %v358, 0.5
        %v415 = vsub.f32 %v359, 0.48145467
        %v416 = vsub.f32 %v360, 0.48145467
        %v417 = vsub.f32 %v361, 0.48145467
        %v418 = vsub.f32 %v362, 0.48145467
        %v419 = vsub.f32 %v363, 0.48145467
        %v420 = vsub.f32 %v364, 0.48145467
        %v421 = vsub.f32 %v365, 0.48145467
        %v422 = vsub.f32 %v366, 0.48145467
        %v423 = vsub.f32 %v367, 0.48145467
        %v424 = vsub.f32 %v368, 0.48145467
        %v425 = vsub.f32 %v369, 0.48145467
        %v426 = vsub.f32 %v370, 0.48145467
        %v427 = vsub.f32 %v371, 0.48145467
        %v428 = vsub.f32 %v372, 0.48145467
        %v429 = vsub.f32 %v373, 0.48145467
        %v430 = vsub.f32 %v374, 0.48145467
        %v431 = vsub.f32 %v375, 0.48145467
        %v432 = vsub.f32 %v376, 0.48145467
        %v433 = vsub.f32 %v377, 0.48145467
        %v434 = vsub.f32 %v378, 0.48145467
        %v435 = vsub.f32 %v379, 0.48145467
        %v436 = vsub.f32 %v380, 0.48145467
        %v437 = vsub.f32 %v381, 0.48145467
        %v438 = vsub.f32 %v382, 0.48145467
        %v439 = vsub.f32 %v383, 0.48145467
        %v440 = vsub.f32 %v384, 0.48145467
        %v441 = vsub.f32 %v385, 0.48145467
        %v442 = vsub.f32 %v386, 0.48145467
        %v443 = vsub.f32 %v387, 0.48145467
        %v444 = vsub.f32 %v388, 0.48145467
        %v445 = vsub.f32 %v389, 0.48145467
        %v446 = vsub.f32 %v390, 0.48145467
        %v447 = vsub.f32 %v391, 0.48145467
        %v448 = vsub.f32 %v392, 0.48145467
        %v449 = vsub.f32 %v393, 0.48145467
        %v450 = vsub.f32 %v394, 0.48145467
        %v451 = vsub.f32 %v395, 0.48145467
        %v452 = vsub.f32 %v396, 0.48145467
        %v453 = vsub.f32 %v397, 0.48145467
        %v454 = vsub.f32 %v398, 0.48145467
        %v455 = vsub.f32 %v399, 0.48145467
        %v456 = vsub.f32 %v400, 0.48145467
        %v457 = vsub.f32 %v401, 0.48145467
        %v458 = vsub.f32 %v402, 0.48145467
        %v459 = vsub.f32 %v403, 0.48145467
        %v460 = vsub.f32 %v404, 0.48145467
        %v461 = vsub.f32 %v405, 0.48145467
        %v462 = vsub.f32 %v406, 0.48145467
        %v463 = vsub.f32 %v407, 0.48145467
        %v464 = vsub.f32 %v408, 0.48145467
        %v465 = vsub.f32 %v409, 0.48145467
        %v466 = vsub.f32 %v410, 0.48145467
        %v467 = vsub.f32 %v411, 0.48145467
        %v468 = vsub.f32 %v412, 0.48145467
        %v469 = vsub.f32 %v413, 0.48145467
        %v470 = vsub.f32 %v414, 0.48145467
        %v471 = vmul.f32 %v415, 3.7225988
        %v472 = vmul.f32 %v416, 3.7225988
        %v473 = vmul.f32 %v417, 3.7225988
        %v474 = vmul.f32 %v418, 3.7225988
        %v475 = vmul.f32 %v419, 3.7225988
        %v476 = vmul.f32 %v420, 3.7225988
        %v477 = vmul.f32 %v421, 3.7225988
        %v478 = vmul.f32 %v422, 3.7225988
        %v479 = vmul.f32 %v423, 3.7225988
        %v480 = vmul.f32 %v424, 3.7225988
        %v481 = vmul.f32 %v425, 3.7225988
        %v482 = vmul.f32 %v426, 3.7225988
        %v483 = vmul.f32 %v427, 3.7225988
        %v484 = vmul.f32 %v428, 3.7225988
        %v485 = vmul.f32 %v429, 3.7225988
        %v486 = vmul.f32 %v430, 3.7225988
        %v487 = vmul.f32 %v431, 3.7225988
        %v488 = vmul.f32 %v432, 3.7225988
        %v489 = vmul.f32 %v433, 3.7225988
        %v490 = vmul.f32 %v434, 3.7225988
        %v491 = vmul.f32 %v435, 3.7225988
        %v492 = vmul.f32 %v436, 3.7225988
        %v493 = vmul.f32 %v437, 3.7225988
        %v494 = vmul.f32 %v438, 3.7225988
        %v495 = vmul.f32 %v439, 3.7225988
        %v496 = vmul.f32 %v440, 3.7225988
        %v497 = vmul.f32 %v441, 3.7225988
        %v498 = vmul.f32 %v442, 3.7225988
        %v499 = vmul.f32 %v443, 3.7225988
        %v500 = vmul.f32 %v444, 3.7225988
        %v501 = vmul.f32 %v445, 3.7225988
        %v502 = vmul.f32 %v446, 3.7225988
        %v503 = vmul.f32 %v447, 3.7225988
        %v504 = vmul.f32 %v448, 3.7225988
        %v505 = vmul.f32 %v449, 3.7225988
        %v506 = vmul.f32 %v450, 3.7225988
        %v507 = vmul.f32 %v451, 3.7225988
        %v508 = vmul.f32 %v452, 3.7225988
        %v509 = vmul.f32 %v453, 3.7225988
        %v510 = vmul.f32 %v454, 3.7225988
        %v511 = vmul.f32 %v455, 3.7225988
        %v512 = vmul.f32 %v456, 3.7225988
        %v513 = vmul.f32 %v457, 3.7225988
        %v514 = vmul.f32 %v458, 3.7225988
        %v515 = vmul.f32 %v459, 3.7225988
        %v516 = vmul.f32 %v460, 3.7225988
        %v517 = vmul.f32 %v461, 3.7225988
        %v518 = vmul.f32 %v462, 3.7225988
        %v519 = vmul.f32 %v463, 3.7225988
        %v520 = vmul.f32 %v464, 3.7225988
        %v521 = vmul.f32 %v465, 3.7225988
        %v522 = vmul.f32 %v466, 3.7225988
        %v523 = vmul.f32 %v467, 3.7225988
        %v524 = vmul.f32 %v468, 3.7225988
        %v525 = vmul.f32 %v469, 3.7225988
        %v526 = vmul.f32 %v470, 3.7225988
        %527 = vst [vmem:[%s134] sm:$0xff] %v471
        %vm528 = vcmask 785408
        %529 = vst.msk [vmem:[%s134 + $0x8] sm:$0xff] %vm528, %v472
        %530 = vst [vmem:[%s134 + $0x10] sm:$0xff] %v473
        %531 = vst.msk [vmem:[%s134 + $0x18] sm:$0xff] %vm528, %v474
        %532 = vst [vmem:[%s134 + $0x20] sm:$0xff] %v475
        %533 = vst.msk [vmem:[%s134 + $0x28] sm:$0xff] %vm528, %v476
        %534 = vst [vmem:[%s134 + $0x30] sm:$0xff] %v477
        %535 = vst.msk [vmem:[%s134 + $0x38] sm:$0xff] %vm528, %v478
        %536 = vst [vmem:[%s134 + $0x40] sm:$0xff] %v479
        %537 = vst.msk [vmem:[%s134 + $0x48] sm:$0xff] %vm528, %v480
        %538 = vst [vmem:[%s134 + $0x50] sm:$0xff] %v481
        %539 = vst.msk [vmem:[%s134 + $0x58] sm:$0xff] %vm528, %v482
        %540 = vst [vmem:[%s134 + $0x60] sm:$0xff] %v483
        %541 = vst.msk [vmem:[%s134 + $0x68] sm:$0xff] %vm528, %v484
        %542 = vst [vmem:[%s134 + $0x70] sm:$0xff] %v485
        %543 = vst.msk [vmem:[%s134 + $0x78] sm:$0xff] %vm528, %v486
        %544 = vst [vmem:[%s134 + $0x80] sm:$0xff] %v487
        %545 = vst.msk [vmem:[%s134 + $0x88] sm:$0xff] %vm528, %v488
        %546 = vst [vmem:[%s134 + $0x90] sm:$0xff] %v489
        %547 = vst.msk [vmem:[%s134 + $0x98] sm:$0xff] %vm528, %v490
        %548 = vst [vmem:[%s134 + $0xa0] sm:$0xff] %v491
        %549 = vst.msk [vmem:[%s134 + $0xa8] sm:$0xff] %vm528, %v492
        %550 = vst [vmem:[%s134 + $0xb0] sm:$0xff] %v493
        %551 = vst.msk [vmem:[%s134 + $0xb8] sm:$0xff] %vm528, %v494
        %552 = vst [vmem:[%s134 + $0xc0] sm:$0xff] %v495
        %553 = vst.msk [vmem:[%s134 + $0xc8] sm:$0xff] %vm528, %v496
        %554 = vst [vmem:[%s134 + $0xd0] sm:$0xff] %v497
        %555 = vst.msk [vmem:[%s134 + $0xd8] sm:$0xff] %vm528, %v498
        %556 = vst [vmem:[%s134 + $0xe0] sm:$0xff] %v499
        %557 = vst.msk [vmem:[%s134 + $0xe8] sm:$0xff] %vm528, %v500
        %558 = vst [vmem:[%s134 + $0xf0] sm:$0xff] %v501
        %559 = vst.msk [vmem:[%s134 + $0xf8] sm:$0xff] %vm528, %v502
        %560 = vst [vmem:[%s134 + $0x100] sm:$0xff] %v503
        %561 = vst.msk [vmem:[%s134 + $0x108] sm:$0xff] %vm528, %v504
        %562 = vst [vmem:[%s134 + $0x110] sm:$0xff] %v505
        %563 = vst.msk [vmem:[%s134 + $0x118] sm:$0xff] %vm528, %v506
        %564 = vst [vmem:[%s134 + $0x120] sm:$0xff] %v507
        %565 = vst.msk [vmem:[%s134 + $0x128] sm:$0xff] %vm528, %v508
        %566 = vst [vmem:[%s134 + $0x130] sm:$0xff] %v509
        %567 = vst.msk [vmem:[%s134 + $0x138] sm:$0xff] %vm528, %v510
        %568 = vst [vmem:[%s134 + $0x140] sm:$0xff] %v511
        %569 = vst.msk [vmem:[%s134 + $0x148] sm:$0xff] %vm528, %v512
        %570 = vst [vmem:[%s134 + $0x150] sm:$0xff] %v513
        %571 = vst.msk [vmem:[%s134 + $0x158] sm:$0xff] %vm528, %v514
        %572 = vst [vmem:[%s134 + $0x160] sm:$0xff] %v515
        %573 = vst.msk [vmem:[%s134 + $0x168] sm:$0xff] %vm528, %v516
        %574 = vst [vmem:[%s134 + $0x170] sm:$0xff] %v517
        %575 = vst.msk [vmem:[%s134 + $0x178] sm:$0xff] %vm528, %v518
        %576 = vst [vmem:[%s134 + $0x180] sm:$0xff] %v519
        %577 = vst.msk [vmem:[%s134 + $0x188] sm:$0xff] %vm528, %v520
        %578 = vst [vmem:[%s134 + $0x190] sm:$0xff] %v521
        %579 = vst.msk [vmem:[%s134 + $0x198] sm:$0xff] %vm528, %v522
        %580 = vst [vmem:[%s134 + $0x1a0] sm:$0xff] %v523
        %581 = vst.msk [vmem:[%s134 + $0x1a8] sm:$0xff] %vm528, %v524
        %582 = vst [vmem:[%s134 + $0x1b0] sm:$0xff] %v525
        %583 = vst.msk [vmem:[%s134 + $0x1b8] sm:$0xff] %vm528, %v526
        %s584 = scalar_lea.vmem %s116, 448 [#allocation2]
        %v585 = vld [vmem:[%s584] sm:$0xff]
        %v586 = vld [vmem:[%s584 + $0x8] sm:$0xff]
        %v587 = vld [vmem:[%s584 + $0x10] sm:$0xff]
        %v588 = vld [vmem:[%s584 + $0x18] sm:$0xff]
        %v589 = vld [vmem:[%s584 + $0x20] sm:$0xff]
        %v590 = vld [vmem:[%s584 + $0x28] sm:$0xff]
        %v591 = vld [vmem:[%s584 + $0x30] sm:$0xff]
        %v592 = vld [vmem:[%s584 + $0x38] sm:$0xff]
        %v593 = vld [vmem:[%s584 + $0x40] sm:$0xff]
        %v594 = vld [vmem:[%s584 + $0x48] sm:$0xff]
        %v595 = vld [vmem:[%s584 + $0x50] sm:$0xff]
        %v596 = vld [vmem:[%s584 + $0x58] sm:$0xff]
        %v597 = vld [vmem:[%s584 + $0x60] sm:$0xff]
        %v598 = vld [vmem:[%s584 + $0x68] sm:$0xff]
        %v599 = vld [vmem:[%s584 + $0x70] sm:$0xff]
        %v600 = vld [vmem:[%s584 + $0x78] sm:$0xff]
        %v601 = vld [vmem:[%s584 + $0x80] sm:$0xff]
        %v602 = vld [vmem:[%s584 + $0x88] sm:$0xff]
        %v603 = vld [vmem:[%s584 + $0x90] sm:$0xff]
        %v604 = vld [vmem:[%s584 + $0x98] sm:$0xff]
        %v605 = vld [vmem:[%s584 + $0xa0] sm:$0xff]
        %v606 = vld [vmem:[%s584 + $0xa8] sm:$0xff]
        %v607 = vld [vmem:[%s584 + $0xb0] sm:$0xff]
        %v608 = vld [vmem:[%s584 + $0xb8] sm:$0xff]
        %v609 = vld [vmem:[%s584 + $0xc0] sm:$0xff]
        %v610 = vld [vmem:[%s584 + $0xc8] sm:$0xff]
        %v611 = vld [vmem:[%s584 + $0xd0] sm:$0xff]
        %v612 = vld [vmem:[%s584 + $0xd8] sm:$0xff]
        %v613 = vld [vmem:[%s584 + $0xe0] sm:$0xff]
        %v614 = vld [vmem:[%s584 + $0xe8] sm:$0xff]
        %v615 = vld [vmem:[%s584 + $0xf0] sm:$0xff]
        %v616 = vld [vmem:[%s584 + $0xf8] sm:$0xff]
        %v617 = vld [vmem:[%s584 + $0x100] sm:$0xff]
        %v618 = vld [vmem:[%s584 + $0x108] sm:$0xff]
        %v619 = vld [vmem:[%s584 + $0x110] sm:$0xff]
        %v620 = vld [vmem:[%s584 + $0x118] sm:$0xff]
        %v621 = vld [vmem:[%s584 + $0x120] sm:$0xff]
        %v622 = vld [vmem:[%s584 + $0x128] sm:$0xff]
        %v623 = vld [vmem:[%s584 + $0x130] sm:$0xff]
        %v624 = vld [vmem:[%s584 + $0x138] sm:$0xff]
        %v625 = vld [vmem:[%s584 + $0x140] sm:$0xff]
        %v626 = vld [vmem:[%s584 + $0x148] sm:$0xff]
        %v627 = vld [vmem:[%s584 + $0x150] sm:$0xff]
        %v628 = vld [vmem:[%s584 + $0x158] sm:$0xff]
        %v629 = vld [vmem:[%s584 + $0x160] sm:$0xff]
        %v630 = vld [vmem:[%s584 + $0x168] sm:$0xff]
        %v631 = vld [vmem:[%s584 + $0x170] sm:$0xff]
        %v632 = vld [vmem:[%s584 + $0x178] sm:$0xff]
        %v633 = vld [vmem:[%s584 + $0x180] sm:$0xff]
        %v634 = vld [vmem:[%s584 + $0x188] sm:$0xff]
        %v635 = vld [vmem:[%s584 + $0x190] sm:$0xff]
        %v636 = vld [vmem:[%s584 + $0x198] sm:$0xff]
        %v637 = vld [vmem:[%s584 + $0x1a0] sm:$0xff]
        %v638 = vld [vmem:[%s584 + $0x1a8] sm:$0xff]
        %v639 = vld [vmem:[%s584 + $0x1b0] sm:$0xff]
        %v640 = vld [vmem:[%s584 + $0x1b8] sm:$0xff]
        %v641 = vmax.f32 %v585, -1.0
        %v642 = vmax.f32 %v586, -1.0
        %v643 = vmax.f32 %v587, -1.0
        %v644 = vmax.f32 %v588, -1.0
        %v645 = vmax.f32 %v589, -1.0
        %v646 = vmax.f32 %v590, -1.0
        %v647 = vmax.f32 %v591, -1.0
        %v648 = vmax.f32 %v592, -1.0
        %v649 = vmax.f32 %v593, -1.0
        %v650 = vmax.f32 %v594, -1.0
        %v651 = vmax.f32 %v595, -1.0
        %v652 = vmax.f32 %v596, -1.0
        %v653 = vmax.f32 %v597, -1.0
        %v654 = vmax.f32 %v598, -1.0
        %v655 = vmax.f32 %v599, -1.0
        %v656 = vmax.f32 %v600, -1.0
        %v657 = vmax.f32 %v601, -1.0
        %v658 = vmax.f32 %v602, -1.0
        %v659 = vmax.f32 %v603, -1.0
        %v660 = vmax.f32 %v604, -1.0
        %v661 = vmax.f32 %v605, -1.0
        %v662 = vmax.f32 %v606, -1.0
        %v663 = vmax.f32 %v607, -1.0
        %v664 = vmax.f32 %v608, -1.0
        %v665 = vmax.f32 %v609, -1.0
        %v666 = vmax.f32 %v610, -1.0
        %v667 = vmax.f32 %v611, -1.0
        %v668 = vmax.f32 %v612, -1.0
        %v669 = vmax.f32 %v613, -1.0
        %v670 = vmax.f32 %v614, -1.0
        %v671 = vmax.f32 %v615, -1.0
        %v672 = vmax.f32 %v616, -1.0
        %v673 = vmax.f32 %v617, -1.0
        %v674 = vmax.f32 %v618, -1.0
        %v675 = vmax.f32 %v619, -1.0
        %v676 = vmax.f32 %v620, -1.0
        %v677 = vmax.f32 %v621, -1.0
        %v678 = vmax.f32 %v622, -1.0
        %v679 = vmax.f32 %v623, -1.0
        %v680 = vmax.f32 %v624, -1.0
        %v681 = vmax.f32 %v625, -1.0
        %v682 = vmax.f32 %v626, -1.0
        %v683 = vmax.f32 %v627, -1.0
        %v684 = vmax.f32 %v628, -1.0
        %v685 = vmax.f32 %v629, -1.0
        %v686 = vmax.f32 %v630, -1.0
        %v687 = vmax.f32 %v631, -1.0
        %v688 = vmax.f32 %v632, -1.0
        %v689 = vmax.f32 %v633, -1.0
        %v690 = vmax.f32 %v634, -1.0
        %v691 = vmax.f32 %v635, -1.0
        %v692 = vmax.f32 %v636, -1.0
        %v693 = vmax.f32 %v637, -1.0
        %v694 = vmax.f32 %v638, -1.0
        %v695 = vmax.f32 %v639, -1.0
        %v696 = vmax.f32 %v640, -1.0
        %v697 = vmin.f32 %v641, 1.0
        %v698 = vmin.f32 %v642, 1.0
        %v699 = vmin.f32 %v643, 1.0
        %v700 = vmin.f32 %v644, 1.0
        %v701 = vmin.f32 %v645, 1.0
        %v702 = vmin.f32 %v646, 1.0
        %v703 = vmin.f32 %v647, 1.0
        %v704 = vmin.f32 %v648, 1.0
        %v705 = vmin.f32 %v649, 1.0
        %v706 = vmin.f32 %v650, 1.0
        %v707 = vmin.f32 %v651, 1.0
        %v708 = vmin.f32 %v652, 1.0
        %v709 = vmin.f32 %v653, 1.0
        %v710 = vmin.f32 %v654, 1.0
        %v711 = vmin.f32 %v655, 1.0
        %v712 = vmin.f32 %v656, 1.0
        %v713 = vmin.f32 %v657, 1.0
        %v714 = vmin.f32 %v658, 1.0
        %v715 = vmin.f32 %v659, 1.0
        %v716 = vmin.f32 %v660, 1.0
        %v717 = vmin.f32 %v661, 1.0
        %v718 = vmin.f32 %v662, 1.0
        %v719 = vmin.f32 %v663, 1.0
        %v720 = vmin.f32 %v664, 1.0
        %v721 = vmin.f32 %v665, 1.0
        %v722 = vmin.f32 %v666, 1.0
        %v723 = vmin.f32 %v667, 1.0
        %v724 = vmin.f32 %v668, 1.0
        %v725 = vmin.f32 %v669, 1.0
        %v726 = vmin.f32 %v670, 1.0
        %v727 = vmin.f32 %v671, 1.0
        %v728 = vmin.f32 %v672, 1.0
        %v729 = vmin.f32 %v673, 1.0
        %v730 = vmin.f32 %v674, 1.0
        %v731 = vmin.f32 %v675, 1.0
        %v732 = vmin.f32 %v676, 1.0
        %v733 = vmin.f32 %v677, 1.0
        %v734 = vmin.f32 %v678, 1.0
        %v735 = vmin.f32 %v679, 1.0
        %v736 = vmin.f32 %v680, 1.0
        %v737 = vmin.f32 %v681, 1.0
        %v738 = vmin.f32 %v682, 1.0
        %v739 = vmin.f32 %v683, 1.0
        %v740 = vmin.f32 %v684, 1.0
        %v741 = vmin.f32 %v685, 1.0
        %v742 = vmin.f32 %v686, 1.0
        %v743 = vmin.f32 %v687, 1.0
        %v744 = vmin.f32 %v688, 1.0
        %v745 = vmin.f32 %v689, 1.0
        %v746 = vmin.f32 %v690, 1.0
        %v747 = vmin.f32 %v691, 1.0
        %v748 = vmin.f32 %v692, 1.0
        %v749 = vmin.f32 %v693, 1.0
        %v750 = vmin.f32 %v694, 1.0
        %v751 = vmin.f32 %v695, 1.0
        %v752 = vmin.f32 %v696, 1.0
        %v753 = vadd.f32 %v697, 1.0
        %v754 = vadd.f32 %v698, 1.0
        %v755 = vadd.f32 %v699, 1.0
        %v756 = vadd.f32 %v700, 1.0
        %v757 = vadd.f32 %v701, 1.0
        %v758 = vadd.f32 %v702, 1.0
        %v759 = vadd.f32 %v703, 1.0
        %v760 = vadd.f32 %v704, 1.0
        %v761 = vadd.f32 %v705, 1.0
        %v762 = vadd.f32 %v706, 1.0
        %v763 = vadd.f32 %v707, 1.0
        %v764 = vadd.f32 %v708, 1.0
        %v765 = vadd.f32 %v709, 1.0
        %v766 = vadd.f32 %v710, 1.0
        %v767 = vadd.f32 %v711, 1.0
        %v768 = vadd.f32 %v712, 1.0
        %v769 = vadd.f32 %v713, 1.0
        %v770 = vadd.f32 %v714, 1.0
        %v771 = vadd.f32 %v715, 1.0
        %v772 = vadd.f32 %v716, 1.0
        %v773 = vadd.f32 %v717, 1.0
        %v774 = vadd.f32 %v718, 1.0
        %v775 = vadd.f32 %v719, 1.0
        %v776 = vadd.f32 %v720, 1.0
        %v777 = vadd.f32 %v721, 1.0
        %v778 = vadd.f32 %v722, 1.0
        %v779 = vadd.f32 %v723, 1.0
        %v780 = vadd.f32 %v724, 1.0
        %v781 = vadd.f32 %v725, 1.0
        %v782 = vadd.f32 %v726, 1.0
        %v783 = vadd.f32 %v727, 1.0
        %v784 = vadd.f32 %v728, 1.0
        %v785 = vadd.f32 %v729, 1.0
        %v786 = vadd.f32 %v730, 1.0
        %v787 = vadd.f32 %v731, 1.0
        %v788 = vadd.f32 %v732, 1.0
        %v789 = vadd.f32 %v733, 1.0
        %v790 = vadd.f32 %v734, 1.0
        %v791 = vadd.f32 %v735, 1.0
        %v792 = vadd.f32 %v736, 1.0
        %v793 = vadd.f32 %v737, 1.0
        %v794 = vadd.f32 %v738, 1.0
        %v795 = vadd.f32 %v739, 1.0
        %v796 = vadd.f32 %v740, 1.0
        %v797 = vadd.f32 %v741, 1.0
        %v798 = vadd.f32 %v742, 1.0
        %v799 = vadd.f32 %v743, 1.0
        %v800 = vadd.f32 %v744, 1.0
        %v801 = vadd.f32 %v745, 1.0
        %v802 = vadd.f32 %v746, 1.0
        %v803 = vadd.f32 %v747, 1.0
        %v804 = vadd.f32 %v748, 1.0
        %v805 = vadd.f32 %v749, 1.0
        %v806 = vadd.f32 %v750, 1.0
        %v807 = vadd.f32 %v751, 1.0
        %v808 = vadd.f32 %v752, 1.0
        %v809 = vmul.f32 %v753, 0.5
        %v810 = vmul.f32 %v754, 0.5
        %v811 = vmul.f32 %v755, 0.5
        %v812 = vmul.f32 %v756, 0.5
        %v813 = vmul.f32 %v757, 0.5
        %v814 = vmul.f32 %v758, 0.5
        %v815 = vmul.f32 %v759, 0.5
        %v816 = vmul.f32 %v760, 0.5
        %v817 = vmul.f32 %v761, 0.5
        %v818 = vmul.f32 %v762, 0.5
        %v819 = vmul.f32 %v763, 0.5
        %v820 = vmul.f32 %v764, 0.5
        %v821 = vmul.f32 %v765, 0.5
        %v822 = vmul.f32 %v766, 0.5
        %v823 = vmul.f32 %v767, 0.5
        %v824 = vmul.f32 %v768, 0.5
        %v825 = vmul.f32 %v769, 0.5
        %v826 = vmul.f32 %v770, 0.5
        %v827 = vmul.f32 %v771, 0.5
        %v828 = vmul.f32 %v772, 0.5
        %v829 = vmul.f32 %v773, 0.5
        %v830 = vmul.f32 %v774, 0.5
        %v831 = vmul.f32 %v775, 0.5
        %v832 = vmul.f32 %v776, 0.5
        %v833 = vmul.f32 %v777, 0.5
        %v834 = vmul.f32 %v778, 0.5
        %v835 = vmul.f32 %v779, 0.5
        %v836 = vmul.f32 %v780, 0.5
        %v837 = vmul.f32 %v781, 0.5
        %v838 = vmul.f32 %v782, 0.5
        %v839 = vmul.f32 %v783, 0.5
        %v840 = vmul.f32 %v784, 0.5
        %v841 = vmul.f32 %v785, 0.5
        %v842 = vmul.f32 %v786, 0.5
        %v843 = vmul.f32 %v787, 0.5
        %v844 = vmul.f32 %v788, 0.5
        %v845 = vmul.f32 %v789, 0.5
        %v846 = vmul.f32 %v790, 0.5
        %v847 = vmul.f32 %v791, 0.5
        %v848 = vmul.f32 %v792, 0.5
        %v849 = vmul.f32 %v793, 0.5
        %v850 = vmul.f32 %v794, 0.5
        %v851 = vmul.f32 %v795, 0.5
        %v852 = vmul.f32 %v796, 0.5
        %v853 = vmul.f32 %v797, 0.5
        %v854 = vmul.f32 %v798, 0.5
        %v855 = vmul.f32 %v799, 0.5
        %v856 = vmul.f32 %v800, 0.5
        %v857 = vmul.f32 %v801, 0.5
        %v858 = vmul.f32 %v802, 0.5
        %v859 = vmul.f32 %v803, 0.5
        %v860 = vmul.f32 %v804, 0.5
        %v861 = vmul.f32 %v805, 0.5
        %v862 = vmul.f32 %v806, 0.5
        %v863 = vmul.f32 %v807, 0.5
        %v864 = vmul.f32 %v808, 0.5
        %v865 = vsub.f32 %v809, 0.4578275
        %v866 = vsub.f32 %v810, 0.4578275
        %v867 = vsub.f32 %v811, 0.4578275
        %v868 = vsub.f32 %v812, 0.4578275
        %v869 = vsub.f32 %v813, 0.4578275
        %v870 = vsub.f32 %v814, 0.4578275
        %v871 = vsub.f32 %v815, 0.4578275
        %v872 = vsub.f32 %v816, 0.4578275
        %v873 = vsub.f32 %v817, 0.4578275
        %v874 = vsub.f32 %v818, 0.4578275
        %v875 = vsub.f32 %v819, 0.4578275
        %v876 = vsub.f32 %v820, 0.4578275
        %v877 = vsub.f32 %v821, 0.4578275
        %v878 = vsub.f32 %v822, 0.4578275
        %v879 = vsub.f32 %v823, 0.4578275
        %v880 = vsub.f32 %v824, 0.4578275
        %v881 = vsub.f32 %v825, 0.4578275
        %v882 = vsub.f32 %v826, 0.4578275
        %v883 = vsub.f32 %v827, 0.4578275
        %v884 = vsub.f32 %v828, 0.4578275
        %v885 = vsub.f32 %v829, 0.4578275
        %v886 = vsub.f32 %v830, 0.4578275
        %v887 = vsub.f32 %v831, 0.4578275
        %v888 = vsub.f32 %v832, 0.4578275
        %v889 = vsub.f32 %v833, 0.4578275
        %v890 = vsub.f32 %v834, 0.4578275
        %v891 = vsub.f32 %v835, 0.4578275
        %v892 = vsub.f32 %v836, 0.4578275
        %v893 = vsub.f32 %v837, 0.4578275
        %v894 = vsub.f32 %v838, 0.4578275
        %v895 = vsub.f32 %v839, 0.4578275
        %v896 = vsub.f32 %v840, 0.4578275
        %v897 = vsub.f32 %v841, 0.4578275
        %v898 = vsub.f32 %v842, 0.4578275
        %v899 = vsub.f32 %v843, 0.4578275
        %v900 = vsub.f32 %v844, 0.4578275
        %v901 = vsub.f32 %v845, 0.4578275
        %v902 = vsub.f32 %v846, 0.4578275
        %v903 = vsub.f32 %v847, 0.4578275
        %v904 = vsub.f32 %v848, 0.4578275
        %v905 = vsub.f32 %v849, 0.4578275
        %v906 = vsub.f32 %v850, 0.4578275
        %v907 = vsub.f32 %v851, 0.4578275
        %v908 = vsub.f32 %v852, 0.4578275
        %v909 = vsub.f32 %v853, 0.4578275
        %v910 = vsub.f32 %v854, 0.4578275
        %v911 = vsub.f32 %v855, 0.4578275
        %v912 = vsub.f32 %v856, 0.4578275
        %v913 = vsub.f32 %v857, 0.4578275
        %v914 = vsub.f32 %v858, 0.4578275
        %v915 = vsub.f32 %v859, 0.4578275
        %v916 = vsub.f32 %v860, 0.4578275
        %v917 = vsub.f32 %v861, 0.4578275
        %v918 = vsub.f32 %v862, 0.4578275
        %v919 = vsub.f32 %v863, 0.4578275
        %v920 = vsub.f32 %v864, 0.4578275
        %v921 = vmul.f32 %v865, 3.826981
        %v922 = vmul.f32 %v866, 3.826981
        %v923 = vmul.f32 %v867, 3.826981
        %v924 = vmul.f32 %v868, 3.826981
        %v925 = vmul.f32 %v869, 3.826981
        %v926 = vmul.f32 %v870, 3.826981
        %v927 = vmul.f32 %v871, 3.826981
        %v928 = vmul.f32 %v872, 3.826981
        %v929 = vmul.f32 %v873, 3.826981
        %v930 = vmul.f32 %v874, 3.826981
        %v931 = vmul.f32 %v875, 3.826981
        %v932 = vmul.f32 %v876, 3.826981
        %v933 = vmul.f32 %v877, 3.826981
        %v934 = vmul.f32 %v878, 3.826981
        %v935 = vmul.f32 %v879, 3.826981
        %v936 = vmul.f32 %v880, 3.826981
        %v937 = vmul.f32 %v881, 3.826981
        %v938 = vmul.f32 %v882, 3.826981
        %v939 = vmul.f32 %v883, 3.826981
        %v940 = vmul.f32 %v884, 3.826981
        %v941 = vmul.f32 %v885, 3.826981
        %v942 = vmul.f32 %v886, 3.826981
        %v943 = vmul.f32 %v887, 3.826981
        %v944 = vmul.f32 %v888, 3.826981
        %v945 = vmul.f32 %v889, 3.826981
        %v946 = vmul.f32 %v890, 3.826981
        %v947 = vmul.f32 %v891, 3.826981
        %v948 = vmul.f32 %v892, 3.826981
        %v949 = vmul.f32 %v893, 3.826981
        %v950 = vmul.f32 %v894, 3.826981
        %v951 = vmul.f32 %v895, 3.826981
        %v952 = vmul.f32 %v896, 3.826981
        %v953 = vmul.f32 %v897, 3.826981
        %v954 = vmul.f32 %v898, 3.826981
        %v955 = vmul.f32 %v899, 3.826981
        %v956 = vmul.f32 %v900, 3.826981
        %v957 = vmul.f32 %v901, 3.826981
        %v958 = vmul.f32 %v902, 3.826981
        %v959 = vmul.f32 %v903, 3.826981
        %v960 = vmul.f32 %v904, 3.826981
        %v961 = vmul.f32 %v905, 3.826981
        %v962 = vmul.f32 %v906, 3.826981
        %v963 = vmul.f32 %v907, 3.826981
        %v964 = vmul.f32 %v908, 3.826981
        %v965 = vmul.f32 %v909, 3.826981
        %v966 = vmul.f32 %v910, 3.826981
        %v967 = vmul.f32 %v911, 3.826981
        %v968 = vmul.f32 %v912, 3.826981
        %v969 = vmul.f32 %v913, 3.826981
        %v970 = vmul.f32 %v914, 3.826981
        %v971 = vmul.f32 %v915, 3.826981
        %v972 = vmul.f32 %v916, 3.826981
        %v973 = vmul.f32 %v917, 3.826981
        %v974 = vmul.f32 %v918, 3.826981
        %v975 = vmul.f32 %v919, 3.826981
        %v976 = vmul.f32 %v920, 3.826981
        %s977 = scalar_lea.vmem %s134, 448 [#allocation5]
        %978 = vst [vmem:[%s977] sm:$0xff] %v921
        %979 = vst.msk [vmem:[%s977 + $0x8] sm:$0xff] %vm528, %v922
        %980 = vst [vmem:[%s977 + $0x10] sm:$0xff] %v923
        %981 = vst.msk [vmem:[%s977 + $0x18] sm:$0xff] %vm528, %v924
        %982 = vst [vmem:[%s977 + $0x20] sm:$0xff] %v925
        %983 = vst.msk [vmem:[%s977 + $0x28] sm:$0xff] %vm528, %v926
        %984 = vst [vmem:[%s977 + $0x30] sm:$0xff] %v927
        %985 = vst.msk [vmem:[%s977 + $0x38] sm:$0xff] %vm528, %v928
        %986 = vst [vmem:[%s977 + $0x40] sm:$0xff] %v929
        %987 = vst.msk [vmem:[%s977 + $0x48] sm:$0xff] %vm528, %v930
        %988 = vst [vmem:[%s977 + $0x50] sm:$0xff] %v931
        %989 = vst.msk [vmem:[%s977 + $0x58] sm:$0xff] %vm528, %v932
        %990 = vst [vmem:[%s977 + $0x60] sm:$0xff] %v933
        %991 = vst.msk [vmem:[%s977 + $0x68] sm:$0xff] %vm528, %v934
        %992 = vst [vmem:[%s977 + $0x70] sm:$0xff] %v935
        %993 = vst.msk [vmem:[%s977 + $0x78] sm:$0xff] %vm528, %v936
        %994 = vst [vmem:[%s977 + $0x80] sm:$0xff] %v937
        %995 = vst.msk [vmem:[%s977 + $0x88] sm:$0xff] %vm528, %v938
        %996 = vst [vmem:[%s977 + $0x90] sm:$0xff] %v939
        %997 = vst.msk [vmem:[%s977 + $0x98] sm:$0xff] %vm528, %v940
        %998 = vst [vmem:[%s977 + $0xa0] sm:$0xff] %v941
        %999 = vst.msk [vmem:[%s977 + $0xa8] sm:$0xff] %vm528, %v942
        %1000 = vst [vmem:[%s977 + $0xb0] sm:$0xff] %v943
        %1001 = vst.msk [vmem:[%s977 + $0xb8] sm:$0xff] %vm528, %v944
        %1002 = vst [vmem:[%s977 + $0xc0] sm:$0xff] %v945
        %1003 = vst.msk [vmem:[%s977 + $0xc8] sm:$0xff] %vm528, %v946
        %1004 = vst [vmem:[%s977 + $0xd0] sm:$0xff] %v947
        %1005 = vst.msk [vmem:[%s977 + $0xd8] sm:$0xff] %vm528, %v948
        %1006 = vst [vmem:[%s977 + $0xe0] sm:$0xff] %v949
        %1007 = vst.msk [vmem:[%s977 + $0xe8] sm:$0xff] %vm528, %v950
        %1008 = vst [vmem:[%s977 + $0xf0] sm:$0xff] %v951
        %1009 = vst.msk [vmem:[%s977 + $0xf8] sm:$0xff] %vm528, %v952
        %1010 = vst [vmem:[%s977 + $0x100] sm:$0xff] %v953
        %1011 = vst.msk [vmem:[%s977 + $0x108] sm:$0xff] %vm528, %v954
        %1012 = vst [vmem:[%s977 + $0x110] sm:$0xff] %v955
        %1013 = vst.msk [vmem:[%s977 + $0x118] sm:$0xff] %vm528, %v956
        %1014 = vst [vmem:[%s977 + $0x120] sm:$0xff] %v957
        %1015 = vst.msk [vmem:[%s977 + $0x128] sm:$0xff] %vm528, %v958
        %1016 = vst [vmem:[%s977 + $0x130] sm:$0xff] %v959
        %1017 = vst.msk [vmem:[%s977 + $0x138] sm:$0xff] %vm528, %v960
        %1018 = vst [vmem:[%s977 + $0x140] sm:$0xff] %v961
        %1019 = vst.msk [vmem:[%s977 + $0x148] sm:$0xff] %vm528, %v962
        %1020 = vst [vmem:[%s977 + $0x150] sm:$0xff] %v963
        %1021 = vst.msk [vmem:[%s977 + $0x158] sm:$0xff] %vm528, %v964
        %1022 = vst [vmem:[%s977 + $0x160] sm:$0xff] %v965
        %1023 = vst.msk [vmem:[%s977 + $0x168] sm:$0xff] %vm528, %v966
        %1024 = vst [vmem:[%s977 + $0x170] sm:$0xff] %v967
        %1025 = vst.msk [vmem:[%s977 + $0x178] sm:$0xff] %vm528, %v968
        %1026 = vst [vmem:[%s977 + $0x180] sm:$0xff] %v969
        %1027 = vst.msk [vmem:[%s977 + $0x188] sm:$0xff] %vm528, %v970
        %1028 = vst [vmem:[%s977 + $0x190] sm:$0xff] %v971
        %1029 = vst.msk [vmem:[%s977 + $0x198] sm:$0xff] %vm528, %v972
        %1030 = vst [vmem:[%s977 + $0x1a0] sm:$0xff] %v973
        %1031 = vst.msk [vmem:[%s977 + $0x1a8] sm:$0xff] %vm528, %v974
        %1032 = vst [vmem:[%s977 + $0x1b0] sm:$0xff] %v975
        %1033 = vst.msk [vmem:[%s977 + $0x1b8] sm:$0xff] %vm528, %v976
        %s1034 = scalar_lea.vmem %s116, 896 [#allocation2]
        %v1035 = vld [vmem:[%s1034] sm:$0xff]
        %v1036 = vld [vmem:[%s1034 + $0x8] sm:$0xff]
        %v1037 = vld [vmem:[%s1034 + $0x10] sm:$0xff]
        %v1038 = vld [vmem:[%s1034 + $0x18] sm:$0xff]
        %v1039 = vld [vmem:[%s1034 + $0x20] sm:$0xff]
        %v1040 = vld [vmem:[%s1034 + $0x28] sm:$0xff]
        %v1041 = vld [vmem:[%s1034 + $0x30] sm:$0xff]
        %v1042 = vld [vmem:[%s1034 + $0x38] sm:$0xff]
        %v1043 = vld [vmem:[%s1034 + $0x40] sm:$0xff]
        %v1044 = vld [vmem:[%s1034 + $0x48] sm:$0xff]
        %v1045 = vld [vmem:[%s1034 + $0x50] sm:$0xff]
        %v1046 = vld [vmem:[%s1034 + $0x58] sm:$0xff]
        %v1047 = vld [vmem:[%s1034 + $0x60] sm:$0xff]
        %v1048 = vld [vmem:[%s1034 + $0x68] sm:$0xff]
        %v1049 = vld [vmem:[%s1034 + $0x70] sm:$0xff]
        %v1050 = vld [vmem:[%s1034 + $0x78] sm:$0xff]
        %v1051 = vld [vmem:[%s1034 + $0x80] sm:$0xff]
        %v1052 = vld [vmem:[%s1034 + $0x88] sm:$0xff]
        %v1053 = vld [vmem:[%s1034 + $0x90] sm:$0xff]
        %v1054 = vld [vmem:[%s1034 + $0x98] sm:$0xff]
        %v1055 = vld [vmem:[%s1034 + $0xa0] sm:$0xff]
        %v1056 = vld [vmem:[%s1034 + $0xa8] sm:$0xff]
        %v1057 = vld [vmem:[%s1034 + $0xb0] sm:$0xff]
        %v1058 = vld [vmem:[%s1034 + $0xb8] sm:$0xff]
        %v1059 = vld [vmem:[%s1034 + $0xc0] sm:$0xff]
        %v1060 = vld [vmem:[%s1034 + $0xc8] sm:$0xff]
        %v1061 = vld [vmem:[%s1034 + $0xd0] sm:$0xff]
        %v1062 = vld [vmem:[%s1034 + $0xd8] sm:$0xff]
        %v1063 = vld [vmem:[%s1034 + $0xe0] sm:$0xff]
        %v1064 = vld [vmem:[%s1034 + $0xe8] sm:$0xff]
        %v1065 = vld [vmem:[%s1034 + $0xf0] sm:$0xff]
        %v1066 = vld [vmem:[%s1034 + $0xf8] sm:$0xff]
        %v1067 = vld [vmem:[%s1034 + $0x100] sm:$0xff]
        %v1068 = vld [vmem:[%s1034 + $0x108] sm:$0xff]
        %v1069 = vld [vmem:[%s1034 + $0x110] sm:$0xff]
        %v1070 = vld [vmem:[%s1034 + $0x118] sm:$0xff]
        %v1071 = vld [vmem:[%s1034 + $0x120] sm:$0xff]
        %v1072 = vld [vmem:[%s1034 + $0x128] sm:$0xff]
        %v1073 = vld [vmem:[%s1034 + $0x130] sm:$0xff]
        %v1074 = vld [vmem:[%s1034 + $0x138] sm:$0xff]
        %v1075 = vld [vmem:[%s1034 + $0x140] sm:$0xff]
        %v1076 = vld [vmem:[%s1034 + $0x148] sm:$0xff]
        %v1077 = vld [vmem:[%s1034 + $0x150] sm:$0xff]
        %v1078 = vld [vmem:[%s1034 + $0x158] sm:$0xff]
        %v1079 = vld [vmem:[%s1034 + $0x160] sm:$0xff]
        %v1080 = vld [vmem:[%s1034 + $0x168] sm:$0xff]
        %v1081 = vld [vmem:[%s1034 + $0x170] sm:$0xff]
        %v1082 = vld [vmem:[%s1034 + $0x178] sm:$0xff]
        %v1083 = vld [vmem:[%s1034 + $0x180] sm:$0xff]
        %v1084 = vld [vmem:[%s1034 + $0x188] sm:$0xff]
        %v1085 = vld [vmem:[%s1034 + $0x190] sm:$0xff]
        %v1086 = vld [vmem:[%s1034 + $0x198] sm:$0xff]
        %v1087 = vld [vmem:[%s1034 + $0x1a0] sm:$0xff]
        %v1088 = vld [vmem:[%s1034 + $0x1a8] sm:$0xff]
        %v1089 = vld [vmem:[%s1034 + $0x1b0] sm:$0xff]
        %v1090 = vld [vmem:[%s1034 + $0x1b8] sm:$0xff]
        %v1091 = vmax.f32 %v1035, -1.0
        %v1092 = vmax.f32 %v1036, -1.0
        %v1093 = vmax.f32 %v1037, -1.0
        %v1094 = vmax.f32 %v1038, -1.0
        %v1095 = vmax.f32 %v1039, -1.0
        %v1096 = vmax.f32 %v1040, -1.0
        %v1097 = vmax.f32 %v1041, -1.0
        %v1098 = vmax.f32 %v1042, -1.0
        %v1099 = vmax.f32 %v1043, -1.0
        %v1100 = vmax.f32 %v1044, -1.0
        %v1101 = vmax.f32 %v1045, -1.0
        %v1102 = vmax.f32 %v1046, -1.0
        %v1103 = vmax.f32 %v1047, -1.0
        %v1104 = vmax.f32 %v1048, -1.0
        %v1105 = vmax.f32 %v1049, -1.0
        %v1106 = vmax.f32 %v1050, -1.0
        %v1107 = vmax.f32 %v1051, -1.0
        %v1108 = vmax.f32 %v1052, -1.0
        %v1109 = vmax.f32 %v1053, -1.0
        %v1110 = vmax.f32 %v1054, -1.0
        %v1111 = vmax.f32 %v1055, -1.0
        %v1112 = vmax.f32 %v1056, -1.0
        %v1113 = vmax.f32 %v1057, -1.0
        %v1114 = vmax.f32 %v1058, -1.0
        %v1115 = vmax.f32 %v1059, -1.0
        %v1116 = vmax.f32 %v1060, -1.0
        %v1117 = vmax.f32 %v1061, -1.0
        %v1118 = vmax.f32 %v1062, -1.0
        %v1119 = vmax.f32 %v1063, -1.0
        %v1120 = vmax.f32 %v1064, -1.0
        %v1121 = vmax.f32 %v1065, -1.0
        %v1122 = vmax.f32 %v1066, -1.0
        %v1123 = vmax.f32 %v1067, -1.0
        %v1124 = vmax.f32 %v1068, -1.0
        %v1125 = vmax.f32 %v1069, -1.0
        %v1126 = vmax.f32 %v1070, -1.0
        %v1127 = vmax.f32 %v1071, -1.0
        %v1128 = vmax.f32 %v1072, -1.0
        %v1129 = vmax.f32 %v1073, -1.0
        %v1130 = vmax.f32 %v1074, -1.0
        %v1131 = vmax.f32 %v1075, -1.0
        %v1132 = vmax.f32 %v1076, -1.0
        %v1133 = vmax.f32 %v1077, -1.0
        %v1134 = vmax.f32 %v1078, -1.0
        %v1135 = vmax.f32 %v1079, -1.0
        %v1136 = vmax.f32 %v1080, -1.0
        %v1137 = vmax.f32 %v1081, -1.0
        %v1138 = vmax.f32 %v1082, -1.0
        %v1139 = vmax.f32 %v1083, -1.0
        %v1140 = vmax.f32 %v1084, -1.0
        %v1141 = vmax.f32 %v1085, -1.0
        %v1142 = vmax.f32 %v1086, -1.0
        %v1143 = vmax.f32 %v1087, -1.0
        %v1144 = vmax.f32 %v1088, -1.0
        %v1145 = vmax.f32 %v1089, -1.0
        %v1146 = vmax.f32 %v1090, -1.0
        %v1147 = vmin.f32 %v1091, 1.0
        %v1148 = vmin.f32 %v1092, 1.0
        %v1149 = vmin.f32 %v1093, 1.0
        %v1150 = vmin.f32 %v1094, 1.0
        %v1151 = vmin.f32 %v1095, 1.0
        %v1152 = vmin.f32 %v1096, 1.0
        %v1153 = vmin.f32 %v1097, 1.0
        %v1154 = vmin.f32 %v1098, 1.0
        %v1155 = vmin.f32 %v1099, 1.0
        %v1156 = vmin.f32 %v1100, 1.0
        %v1157 = vmin.f32 %v1101, 1.0
        %v1158 = vmin.f32 %v1102, 1.0
        %v1159 = vmin.f32 %v1103, 1.0
        %v1160 = vmin.f32 %v1104, 1.0
        %v1161 = vmin.f32 %v1105, 1.0
        %v1162 = vmin.f32 %v1106, 1.0
        %v1163 = vmin.f32 %v1107, 1.0
        %v1164 = vmin.f32 %v1108, 1.0
        %v1165 = vmin.f32 %v1109, 1.0
        %v1166 = vmin.f32 %v1110, 1.0
        %v1167 = vmin.f32 %v1111, 1.0
        %v1168 = vmin.f32 %v1112, 1.0
        %v1169 = vmin.f32 %v1113, 1.0
        %v1170 = vmin.f32 %v1114, 1.0
        %v1171 = vmin.f32 %v1115, 1.0
        %v1172 = vmin.f32 %v1116, 1.0
        %v1173 = vmin.f32 %v1117, 1.0
        %v1174 = vmin.f32 %v1118, 1.0
        %v1175 = vmin.f32 %v1119, 1.0
        %v1176 = vmin.f32 %v1120, 1.0
        %v1177 = vmin.f32 %v1121, 1.0
        %v1178 = vmin.f32 %v1122, 1.0
        %v1179 = vmin.f32 %v1123, 1.0
        %v1180 = vmin.f32 %v1124, 1.0
        %v1181 = vmin.f32 %v1125, 1.0
        %v1182 = vmin.f32 %v1126, 1.0
        %v1183 = vmin.f32 %v1127, 1.0
        %v1184 = vmin.f32 %v1128, 1.0
        %v1185 = vmin.f32 %v1129, 1.0
        %v1186 = vmin.f32 %v1130, 1.0
        %v1187 = vmin.f32 %v1131, 1.0
        %v1188 = vmin.f32 %v1132, 1.0
        %v1189 = vmin.f32 %v1133, 1.0
        %v1190 = vmin.f32 %v1134, 1.0
        %v1191 = vmin.f32 %v1135, 1.0
        %v1192 = vmin.f32 %v1136, 1.0
        %v1193 = vmin.f32 %v1137, 1.0
        %v1194 = vmin.f32 %v1138, 1.0
        %v1195 = vmin.f32 %v1139, 1.0
        %v1196 = vmin.f32 %v1140, 1.0
        %v1197 = vmin.f32 %v1141, 1.0
        %v1198 = vmin.f32 %v1142, 1.0
        %v1199 = vmin.f32 %v1143, 1.0
        %v1200 = vmin.f32 %v1144, 1.0
        %v1201 = vmin.f32 %v1145, 1.0
        %v1202 = vmin.f32 %v1146, 1.0
        %v1203 = vadd.f32 %v1147, 1.0
        %v1204 = vadd.f32 %v1148, 1.0
        %v1205 = vadd.f32 %v1149, 1.0
        %v1206 = vadd.f32 %v1150, 1.0
        %v1207 = vadd.f32 %v1151, 1.0
        %v1208 = vadd.f32 %v1152, 1.0
        %v1209 = vadd.f32 %v1153, 1.0
        %v1210 = vadd.f32 %v1154, 1.0
        %v1211 = vadd.f32 %v1155, 1.0
        %v1212 = vadd.f32 %v1156, 1.0
        %v1213 = vadd.f32 %v1157, 1.0
        %v1214 = vadd.f32 %v1158, 1.0
        %v1215 = vadd.f32 %v1159, 1.0
        %v1216 = vadd.f32 %v1160, 1.0
        %v1217 = vadd.f32 %v1161, 1.0
        %v1218 = vadd.f32 %v1162, 1.0
        %v1219 = vadd.f32 %v1163, 1.0
        %v1220 = vadd.f32 %v1164, 1.0
        %v1221 = vadd.f32 %v1165, 1.0
        %v1222 = vadd.f32 %v1166, 1.0
        %v1223 = vadd.f32 %v1167, 1.0
        %v1224 = vadd.f32 %v1168, 1.0
        %v1225 = vadd.f32 %v1169, 1.0
        %v1226 = vadd.f32 %v1170, 1.0
        %v1227 = vadd.f32 %v1171, 1.0
        %v1228 = vadd.f32 %v1172, 1.0
        %v1229 = vadd.f32 %v1173, 1.0
        %v1230 = vadd.f32 %v1174, 1.0
        %v1231 = vadd.f32 %v1175, 1.0
        %v1232 = vadd.f32 %v1176, 1.0
        %v1233 = vadd.f32 %v1177, 1.0
        %v1234 = vadd.f32 %v1178, 1.0
        %v1235 = vadd.f32 %v1179, 1.0
        %v1236 = vadd.f32 %v1180, 1.0
        %v1237 = vadd.f32 %v1181, 1.0
        %v1238 = vadd.f32 %v1182, 1.0
        %v1239 = vadd.f32 %v1183, 1.0
        %v1240 = vadd.f32 %v1184, 1.0
        %v1241 = vadd.f32 %v1185, 1.0
        %v1242 = vadd.f32 %v1186, 1.0
        %v1243 = vadd.f32 %v1187, 1.0
        %v1244 = vadd.f32 %v1188, 1.0
        %v1245 = vadd.f32 %v1189, 1.0
        %v1246 = vadd.f32 %v1190, 1.0
        %v1247 = vadd.f32 %v1191, 1.0
        %v1248 = vadd.f32 %v1192, 1.0
        %v1249 = vadd.f32 %v1193, 1.0
        %v1250 = vadd.f32 %v1194, 1.0
        %v1251 = vadd.f32 %v1195, 1.0
        %v1252 = vadd.f32 %v1196, 1.0
        %v1253 = vadd.f32 %v1197, 1.0
        %v1254 = vadd.f32 %v1198, 1.0
        %v1255 = vadd.f32 %v1199, 1.0
        %v1256 = vadd.f32 %v1200, 1.0
        %v1257 = vadd.f32 %v1201, 1.0
        %v1258 = vadd.f32 %v1202, 1.0
        %v1259 = vmul.f32 %v1203, 0.5
        %v1260 = vmul.f32 %v1204, 0.5
        %v1261 = vmul.f32 %v1205, 0.5
        %v1262 = vmul.f32 %v1206, 0.5
        %v1263 = vmul.f32 %v1207, 0.5
        %v1264 = vmul.f32 %v1208, 0.5
        %v1265 = vmul.f32 %v1209, 0.5
        %v1266 = vmul.f32 %v1210, 0.5
        %v1267 = vmul.f32 %v1211, 0.5
        %v1268 = vmul.f32 %v1212, 0.5
        %v1269 = vmul.f32 %v1213, 0.5
        %v1270 = vmul.f32 %v1214, 0.5
        %v1271 = vmul.f32 %v1215, 0.5
        %v1272 = vmul.f32 %v1216, 0.5
        %v1273 = vmul.f32 %v1217, 0.5
        %v1274 = vmul.f32 %v1218, 0.5
        %v1275 = vmul.f32 %v1219, 0.5
        %v1276 = vmul.f32 %v1220, 0.5
        %v1277 = vmul.f32 %v1221, 0.5
        %v1278 = vmul.f32 %v1222, 0.5
        %v1279 = vmul.f32 %v1223, 0.5
        %v1280 = vmul.f32 %v1224, 0.5
        %v1281 = vmul.f32 %v1225, 0.5
        %v1282 = vmul.f32 %v1226, 0.5
        %v1283 = vmul.f32 %v1227, 0.5
        %v1284 = vmul.f32 %v1228, 0.5
        %v1285 = vmul.f32 %v1229, 0.5
        %v1286 = vmul.f32 %v1230, 0.5
        %v1287 = vmul.f32 %v1231, 0.5
        %v1288 = vmul.f32 %v1232, 0.5
        %v1289 = vmul.f32 %v1233, 0.5
        %v1290 = vmul.f32 %v1234, 0.5
        %v1291 = vmul.f32 %v1235, 0.5
        %v1292 = vmul.f32 %v1236, 0.5
        %v1293 = vmul.f32 %v1237, 0.5
        %v1294 = vmul.f32 %v1238, 0.5
        %v1295 = vmul.f32 %v1239, 0.5
        %v1296 = vmul.f32 %v1240, 0.5
        %v1297 = vmul.f32 %v1241, 0.5
        %v1298 = vmul.f32 %v1242, 0.5
        %v1299 = vmul.f32 %v1243, 0.5
        %v1300 = vmul.f32 %v1244, 0.5
        %v1301 = vmul.f32 %v1245, 0.5
        %v1302 = vmul.f32 %v1246, 0.5
        %v1303 = vmul.f32 %v1247, 0.5
        %v1304 = vmul.f32 %v1248, 0.5
        %v1305 = vmul.f32 %v1249, 0.5
        %v1306 = vmul.f32 %v1250, 0.5
        %v1307 = vmul.f32 %v1251, 0.5
        %v1308 = vmul.f32 %v1252, 0.5
        %v1309 = vmul.f32 %v1253, 0.5
        %v1310 = vmul.f32 %v1254, 0.5
        %v1311 = vmul.f32 %v1255, 0.5
        %v1312 = vmul.f32 %v1256, 0.5
        %v1313 = vmul.f32 %v1257, 0.5
        %v1314 = vmul.f32 %v1258, 0.5
        %v1315 = vsub.f32 %v1259, 0.40821072
        %v1316 = vsub.f32 %v1260, 0.40821072
        %v1317 = vsub.f32 %v1261, 0.40821072
        %v1318 = vsub.f32 %v1262, 0.40821072
        %v1319 = vsub.f32 %v1263, 0.40821072
        %v1320 = vsub.f32 %v1264, 0.40821072
        %v1321 = vsub.f32 %v1265, 0.40821072
        %v1322 = vsub.f32 %v1266, 0.40821072
        %v1323 = vsub.f32 %v1267, 0.40821072
        %v1324 = vsub.f32 %v1268, 0.40821072
        %v1325 = vsub.f32 %v1269, 0.40821072
        %v1326 = vsub.f32 %v1270, 0.40821072
        %v1327 = vsub.f32 %v1271, 0.40821072
        %v1328 = vsub.f32 %v1272, 0.40821072
        %v1329 = vsub.f32 %v1273, 0.40821072
        %v1330 = vsub.f32 %v1274, 0.40821072
        %v1331 = vsub.f32 %v1275, 0.40821072
        %v1332 = vsub.f32 %v1276, 0.40821072
        %v1333 = vsub.f32 %v1277, 0.40821072
        %v1334 = vsub.f32 %v1278, 0.40821072
        %v1335 = vsub.f32 %v1279, 0.40821072
        %v1336 = vsub.f32 %v1280, 0.40821072
        %v1337 = vsub.f32 %v1281, 0.40821072
        %v1338 = vsub.f32 %v1282, 0.40821072
        %v1339 = vsub.f32 %v1283, 0.40821072
        %v1340 = vsub.f32 %v1284, 0.40821072
        %v1341 = vsub.f32 %v1285, 0.40821072
        %v1342 = vsub.f32 %v1286, 0.40821072
        %v1343 = vsub.f32 %v1287, 0.40821072
        %v1344 = vsub.f32 %v1288, 0.40821072
        %v1345 = vsub.f32 %v1289, 0.40821072
        %v1346 = vsub.f32 %v1290, 0.40821072
        %v1347 = vsub.f32 %v1291, 0.40821072
        %v1348 = vsub.f32 %v1292, 0.40821072
        %v1349 = vsub.f32 %v1293, 0.40821072
        %v1350 = vsub.f32 %v1294, 0.40821072
        %v1351 = vsub.f32 %v1295, 0.40821072
        %v1352 = vsub.f32 %v1296, 0.40821072
        %v1353 = vsub.f32 %v1297, 0.40821072
        %v1354 = vsub.f32 %v1298, 0.40821072
        %v1355 = vsub.f32 %v1299, 0.40821072
        %v1356 = vsub.f32 %v1300, 0.40821072
        %v1357 = vsub.f32 %v1301, 0.40821072
        %v1358 = vsub.f32 %v1302, 0.40821072
        %v1359 = vsub.f32 %v1303, 0.40821072
        %v1360 = vsub.f32 %v1304, 0.40821072
        %v1361 = vsub.f32 %v1305, 0.40821072
        %v1362 = vsub.f32 %v1306, 0.40821072
        %v1363 = vsub.f32 %v1307, 0.40821072
        %v1364 = vsub.f32 %v1308, 0.40821072
        %v1365 = vsub.f32 %v1309, 0.40821072
        %v1366 = vsub.f32 %v1310, 0.40821072
        %v1367 = vsub.f32 %v1311, 0.40821072
        %v1368 = vsub.f32 %v1312, 0.40821072
        %v1369 = vsub.f32 %v1313, 0.40821072
        %v1370 = vsub.f32 %v1314, 0.40821072
        %v1371 = vmul.f32 %v1315, 3.6261168
        %v1372 = vmul.f32 %v1316, 3.6261168
        %v1373 = vmul.f32 %v1317, 3.6261168
        %v1374 = vmul.f32 %v1318, 3.6261168
        %v1375 = vmul.f32 %v1319, 3.6261168
        %v1376 = vmul.f32 %v1320, 3.6261168
        %v1377 = vmul.f32 %v1321, 3.6261168
        %v1378 = vmul.f32 %v1322, 3.6261168
        %v1379 = vmul.f32 %v1323, 3.6261168
        %v1380 = vmul.f32 %v1324, 3.6261168
        %v1381 = vmul.f32 %v1325, 3.6261168
        %v1382 = vmul.f32 %v1326, 3.6261168
        %v1383 = vmul.f32 %v1327, 3.6261168
        %v1384 = vmul.f32 %v1328, 3.6261168
        %v1385 = vmul.f32 %v1329, 3.6261168
        %v1386 = vmul.f32 %v1330, 3.6261168
        %v1387 = vmul.f32 %v1331, 3.6261168
        %v1388 = vmul.f32 %v1332, 3.6261168
        %v1389 = vmul.f32 %v1333, 3.6261168
        %v1390 = vmul.f32 %v1334, 3.6261168
        %v1391 = vmul.f32 %v1335, 3.6261168
        %v1392 = vmul.f32 %v1336, 3.6261168
        %v1393 = vmul.f32 %v1337, 3.6261168
        %v1394 = vmul.f32 %v1338, 3.6261168
        %v1395 = vmul.f32 %v1339, 3.6261168
        %v1396 = vmul.f32 %v1340, 3.6261168
        %v1397 = vmul.f32 %v1341, 3.6261168
        %v1398 = vmul.f32 %v1342, 3.6261168
        %v1399 = vmul.f32 %v1343, 3.6261168
        %v1400 = vmul.f32 %v1344, 3.6261168
        %v1401 = vmul.f32 %v1345, 3.6261168
        %v1402 = vmul.f32 %v1346, 3.6261168
        %v1403 = vmul.f32 %v1347, 3.6261168
        %v1404 = vmul.f32 %v1348, 3.6261168
        %v1405 = vmul.f32 %v1349, 3.6261168
        %v1406 = vmul.f32 %v1350, 3.6261168
        %v1407 = vmul.f32 %v1351, 3.6261168
        %v1408 = vmul.f32 %v1352, 3.6261168
        %v1409 = vmul.f32 %v1353, 3.6261168
        %v1410 = vmul.f32 %v1354, 3.6261168
        %v1411 = vmul.f32 %v1355, 3.6261168
        %v1412 = vmul.f32 %v1356, 3.6261168
        %v1413 = vmul.f32 %v1357, 3.6261168
        %v1414 = vmul.f32 %v1358, 3.6261168
        %v1415 = vmul.f32 %v1359, 3.6261168
        %v1416 = vmul.f32 %v1360, 3.6261168
        %v1417 = vmul.f32 %v1361, 3.6261168
        %v1418 = vmul.f32 %v1362, 3.6261168
        %v1419 = vmul.f32 %v1363, 3.6261168
        %v1420 = vmul.f32 %v1364, 3.6261168
        %v1421 = vmul.f32 %v1365, 3.6261168
        %v1422 = vmul.f32 %v1366, 3.6261168
        %v1423 = vmul.f32 %v1367, 3.6261168
        %v1424 = vmul.f32 %v1368, 3.6261168
        %v1425 = vmul.f32 %v1369, 3.6261168
        %v1426 = vmul.f32 %v1370, 3.6261168
        %s1427 = scalar_lea.vmem %s134, 896 [#allocation5]
        %1428 = vst [vmem:[%s1427] sm:$0xff] %v1371
        %1429 = vst.msk [vmem:[%s1427 + $0x8] sm:$0xff] %vm528, %v1372
        %1430 = vst [vmem:[%s1427 + $0x10] sm:$0xff] %v1373
        %1431 = vst.msk [vmem:[%s1427 + $0x18] sm:$0xff] %vm528, %v1374
        %1432 = vst [vmem:[%s1427 + $0x20] sm:$0xff] %v1375
        %1433 = vst.msk [vmem:[%s1427 + $0x28] sm:$0xff] %vm528, %v1376
        %1434 = vst [vmem:[%s1427 + $0x30] sm:$0xff] %v1377
        %1435 = vst.msk [vmem:[%s1427 + $0x38] sm:$0xff] %vm528, %v1378
        %1436 = vst [vmem:[%s1427 + $0x40] sm:$0xff] %v1379
        %1437 = vst.msk [vmem:[%s1427 + $0x48] sm:$0xff] %vm528, %v1380
        %1438 = vst [vmem:[%s1427 + $0x50] sm:$0xff] %v1381
        %1439 = vst.msk [vmem:[%s1427 + $0x58] sm:$0xff] %vm528, %v1382
        %1440 = vst [vmem:[%s1427 + $0x60] sm:$0xff] %v1383
        %1441 = vst.msk [vmem:[%s1427 + $0x68] sm:$0xff] %vm528, %v1384
        %1442 = vst [vmem:[%s1427 + $0x70] sm:$0xff] %v1385
        %1443 = vst.msk [vmem:[%s1427 + $0x78] sm:$0xff] %vm528, %v1386
        %1444 = vst [vmem:[%s1427 + $0x80] sm:$0xff] %v1387
        %1445 = vst.msk [vmem:[%s1427 + $0x88] sm:$0xff] %vm528, %v1388
        %1446 = vst [vmem:[%s1427 + $0x90] sm:$0xff] %v1389
        %1447 = vst.msk [vmem:[%s1427 + $0x98] sm:$0xff] %vm528, %v1390
        %1448 = vst [vmem:[%s1427 + $0xa0] sm:$0xff] %v1391
        %1449 = vst.msk [vmem:[%s1427 + $0xa8] sm:$0xff] %vm528, %v1392
        %1450 = vst [vmem:[%s1427 + $0xb0] sm:$0xff] %v1393
        %1451 = vst.msk [vmem:[%s1427 + $0xb8] sm:$0xff] %vm528, %v1394
        %1452 = vst [vmem:[%s1427 + $0xc0] sm:$0xff] %v1395
        %1453 = vst.msk [vmem:[%s1427 + $0xc8] sm:$0xff] %vm528, %v1396
        %1454 = vst [vmem:[%s1427 + $0xd0] sm:$0xff] %v1397
        %1455 = vst.msk [vmem:[%s1427 + $0xd8] sm:$0xff] %vm528, %v1398
        %1456 = vst [vmem:[%s1427 + $0xe0] sm:$0xff] %v1399
        %1457 = vst.msk [vmem:[%s1427 + $0xe8] sm:$0xff] %vm528, %v1400
        %1458 = vst [vmem:[%s1427 + $0xf0] sm:$0xff] %v1401
        %1459 = vst.msk [vmem:[%s1427 + $0xf8] sm:$0xff] %vm528, %v1402
        %1460 = vst [vmem:[%s1427 + $0x100] sm:$0xff] %v1403
        %1461 = vst.msk [vmem:[%s1427 + $0x108] sm:$0xff] %vm528, %v1404
        %1462 = vst [vmem:[%s1427 + $0x110] sm:$0xff] %v1405
        %1463 = vst.msk [vmem:[%s1427 + $0x118] sm:$0xff] %vm528, %v1406
        %1464 = vst [vmem:[%s1427 + $0x120] sm:$0xff] %v1407
        %1465 = vst.msk [vmem:[%s1427 + $0x128] sm:$0xff] %vm528, %v1408
        %1466 = vst [vmem:[%s1427 + $0x130] sm:$0xff] %v1409
        %1467 = vst.msk [vmem:[%s1427 + $0x138] sm:$0xff] %vm528, %v1410
        %1468 = vst [vmem:[%s1427 + $0x140] sm:$0xff] %v1411
        %1469 = vst.msk [vmem:[%s1427 + $0x148] sm:$0xff] %vm528, %v1412
        %1470 = vst [vmem:[%s1427 + $0x150] sm:$0xff] %v1413
        %1471 = vst.msk [vmem:[%s1427 + $0x158] sm:$0xff] %vm528, %v1414
        %1472 = vst [vmem:[%s1427 + $0x160] sm:$0xff] %v1415
        %1473 = vst.msk [vmem:[%s1427 + $0x168] sm:$0xff] %vm528, %v1416
        %1474 = vst [vmem:[%s1427 + $0x170] sm:$0xff] %v1417
        %1475 = vst.msk [vmem:[%s1427 + $0x178] sm:$0xff] %vm528, %v1418
        %1476 = vst [vmem:[%s1427 + $0x180] sm:$0xff] %v1419
        %1477 = vst.msk [vmem:[%s1427 + $0x188] sm:$0xff] %vm528, %v1420
        %1478 = vst [vmem:[%s1427 + $0x190] sm:$0xff] %v1421
        %1479 = vst.msk [vmem:[%s1427 + $0x198] sm:$0xff] %vm528, %v1422
        %1480 = vst [vmem:[%s1427 + $0x1a0] sm:$0xff] %v1423
        %1481 = vst.msk [vmem:[%s1427 + $0x1a8] sm:$0xff] %vm528, %v1424
        %1482 = vst [vmem:[%s1427 + $0x1b0] sm:$0xff] %v1425
        %1483 = vst.msk [vmem:[%s1427 + $0x1b8] sm:$0xff] %vm528, %v1426
        %s1484 = sand.u32 %s52, 1
        %s1485 = scalar_lea.sflag [#allocation4], %s1484
        %s1486 = sand.u32 %s52, 1
        %s1487 = smul.addr %s1486, 1344
        %s1488 = scalar_lea.vmem [#allocation5], %s1487
        // Predicated region
        $region29: #{tpu_custom_call.1} parent=23 // pred_check
          %p1489 = pneg %p62
        $region30: #{tpu_custom_call.1} parent=23 // pred_check_branch
          %1491 = sbr.rel (%p1489) target = $region32
        $region31: #{tpu_custom_call.1} parent=23 // pred_region
          %s1493 = ssub.s32 21504, 21504
          %1494 = vsyncadd %s1485, %s1493
          %s1495 = smul.addr %s18, 168
          %s1496 = smul.addr %s1495, 128
          %s1497 = scalar_lea.hbm %s1, %s1496
          %s1498 = sshll.u32 %s1488, 4
          %s1499 = int_to_ptr.vmem [resolvable:$true] %s1498
          %1504 = dma.vmem_to_hbm [thread:$0]  %s1499, 21504, %s1497, %s1485, 256, 256, 16
        $region32: #{tpu_custom_call.1} parent=23 // pred_fallthru
          _
      $region24: #{tpu_custom_call.1} parent=5 // pred_fallthru
        _
      %p1505 = scmp.le.s32.totalorder 2, %s13
      // Predicated region
      $region33: #{tpu_custom_call.1} parent=5 // pred_check
        %p1506 = pneg %p1505
      $region34: #{tpu_custom_call.1} parent=5 // pred_check_branch
        %1508 = sbr.rel (%p1506) target = $region36
      $region35: #{tpu_custom_call.1} parent=5 // pred_region
        %s1509 = ssub.s32 %s13, 2
        // Predicated region
        $region37: #{tpu_custom_call.1} parent=35 // pred_check
          %p1510 = pneg %p68
        $region38: #{tpu_custom_call.1} parent=35 // pred_check_branch
          %1512 = sbr.rel (%p1510) target = $region40
        $region39: #{tpu_custom_call.1} parent=35 // pred_region
          %s1513 = sand.u32 %s53, 1
          %s1514 = scalar_lea.sflag [#allocation4], %s1513
          %s1515 = sand.u32 %s53, 1
          %s1516 = smul.addr %s1515, 1344
          %s1517 = scalar_lea.vmem [#allocation5], %s1516
          %1518 = dma.done %s1514, 21504
        $region40: #{tpu_custom_call.1} parent=35 // pred_fallthru
          _
      $region36: #{tpu_custom_call.1} parent=5 // pred_fallthru
        _
    $region6: #{tpu_custom_call.1} parent=1 // loop_footer
      %s17 = sadd.s32 1, %s13
    $region7: #{tpu_custom_call.1} parent=1 // loop_footer_branch
      %12 = sbr.rel target = $region3
    $region8: #{tpu_custom_call.1} parent=1 // loop_exit
      _
    %1519 = vsyncpa [#allocation3], 1
    %s1520 = scalar_lea.sflag [#allocation3], 1
    %1521 = vsyncpa %s1520, 1
    %1522 = vsyncpa [#allocation4], 1
    %s1523 = scalar_lea.sflag [#allocation4], 1
    %1524 = vsyncpa %s1523, 1

</llo_original>
